<compile_context>
chip_gen: v7x
topology: tpu7x:2x2x1
jax: 0.10.0
libtpu: 0.0.40
codegen_flags: <defaults>
</compile_context>

<pallas_src>
import jax
import jax.numpy as jnp
from jax.experimental import pallas as pl
from jax.experimental.pallas import tpu as pltpu


def attn_decoder_kernel(enc_ref, x2_ref, wav_ref, wih0_ref, b0_ref,
                        wm_ref, b1_ref, whh1_ref, wfc_ref, bfc_ref, out_ref):
    B = enc_ref.shape[0]
    S = wav_ref.shape[1]
    H4 = wih0_ref.shape[1]
    H = H4 // 4

    # ---- attention path (h_0 == 0, so its W_attn columns contribute zero) ----
    logits = jnp.dot(enc_ref[...], wav_ref[...],
                     preferred_element_type=jnp.float32)            # (B, S)
    m = jnp.max(logits, axis=-1, keepdims=True)
    e = jnp.exp(logits - m)
    w_soft = e / jnp.sum(e, axis=-1, keepdims=True)                 # (B, S)

    # ---- layer-0 input projections, hoisted: one matmul for all S inputs ----
    b0 = b0_ref[...]
    b1 = b1_ref[...]
    gx = jnp.dot(x2_ref[...], wih0_ref[...],
                 preferred_element_type=jnp.float32)                # (B*S, 4H)
    gx = gx.reshape(B, S, H4)                                       # sublane split (free)

    # t=0 input projection: (attn_applied @ W_ih0) == softmax-weighted sum of gx
    g0_attn = jnp.sum(w_soft[:, :, None] * gx, axis=1)              # (B, 4H)

    # ---- gate activations on the full (B,4H) vreg, lane-blended (i,f,g,o) ----
    lane = jax.lax.broadcasted_iota(jnp.int32, (B, H4), 1)
    use_tanh = (lane >= 2 * H) & (lane < 3 * H)

    def cell(gates, c_prev):
        a = jnp.where(use_tanh, jnp.tanh(gates), jax.nn.sigmoid(gates))
        i = a[:, 0 * H:1 * H]
        f = a[:, 1 * H:2 * H]
        g = a[:, 2 * H:3 * H]
        o = a[:, 3 * H:4 * H]
        c_new = f * c_prev + i * g
        h_new = o * jnp.tanh(c_new)
        return h_new, c_new

    wm = wm_ref[...]        # (H, 8H) = [W_hh0 | W_ih1]
    whh1 = whh1_ref[...]    # (H, 4H)

    zero = jnp.zeros((B, H), jnp.float32)
    h0, c0 = cell(g0_attn + b0, zero)        # layer 0, timestep 0 (h0(-1)=c0(-1)=0)
    h1, c1 = zero, zero

    # Wavefront over the S+1 LSTM timesteps: each step advances layer 1 at time
    # t and layer 0 at time t+1 off one shared h0(t) @ [W_hh0 | W_ih1] matmul.
    # TODO(synk): nn.LSTM inter-layer dropout is training-mode only; inference
    # semantics (no dropout) are implemented here.
    for t in range(S + 1):
        hm = jnp.dot(h0, wm, preferred_element_type=jnp.float32)    # (B, 8H)
        gates1 = (hm[:, H4:]
                  + jnp.dot(h1, whh1, preferred_element_type=jnp.float32)
                  + b1)
        h1, c1 = cell(gates1, c1)                                   # layer 1, time t
        if t < S:
            gates0 = gx[:, t, :] + hm[:, :H4] + b0
            h0, c0 = cell(gates0, c0)                               # layer 0, time t+1

    out = (jnp.dot(h1, wfc_ref[...], preferred_element_type=jnp.float32)
           + bfc_ref[...])
    out_ref[...] = out.astype(out_ref.dtype)


def init_params(key, input_size, hidden_size, output_size, sequence_length):
    """Deterministic parameter init mirroring the PyTorch module's shapes."""
    SI = sequence_length * input_size
    H = hidden_size
    ks = jax.random.split(key, 12)

    def u(k, shape, fan_in):
        bound = 1.0 / (fan_in ** 0.5)
        return jax.random.uniform(k, shape, jnp.float32, -bound, bound)

    return dict(
        w_attn=u(ks[0], (H, SI + H), SI + H),           # Linear(SI+H, H, bias=False)
        w_v=u(ks[1], (sequence_length, H), H),          # Linear(H, S, bias=False)
        w_ih0=u(ks[2], (4 * H, input_size), H),         # LSTM layer 0
        w_hh0=u(ks[3], (4 * H, H), H),
        b_ih0=u(ks[4], (4 * H,), H),
        b_hh0=u(ks[5], (4 * H,), H),
        w_ih1=u(ks[6], (4 * H, H), H),                  # LSTM layer 1
        w_hh1=u(ks[7], (4 * H, H), H),
        b_ih1=u(ks[8], (4 * H,), H),
        b_hh1=u(ks[9], (4 * H,), H),
        w_fc=u(ks[10], (output_size, H), H),            # Linear(H, O)
        b_fc=u(ks[11], (output_size,), H),
    )


def attn_decoder_forward(x, params):
    B, S, I = x.shape
    H = params["w_hh0"].shape[1]
    O = params["w_fc"].shape[0]
    SI = S * I

    # ---- input-independent weight prep (wrapper side, cacheable) ----
    # NOTE: the module hard-codes h_0 == 0, so only the encoded-input columns
    # of W_attn matter and the two attention Linears compose into one matrix.
    # A non-zero initial hidden state would NOT be supported by this kernel.
    w_av = params["w_attn"][:, :SI].T @ params["w_v"].T              # (SI, S)
    wih0 = params["w_ih0"].T                                         # (I, 4H)
    b0 = (params["b_ih0"] + params["b_hh0"]).reshape(1, 4 * H)
    wm = jnp.concatenate([params["w_hh0"].T, params["w_ih1"].T], 1)  # (H, 8H)
    whh1 = params["w_hh1"].T                                         # (H, 4H)
    b1 = (params["b_ih1"] + params["b_hh1"]).reshape(1, 4 * H)
    wfc = params["w_fc"].T                                           # (H, O)
    bfc = params["b_fc"].reshape(1, O)

    # Reshapes are free in HBM (contiguous); avoid in-kernel lane/sublane merges.
    enc_flat = x.reshape(B, SI)                                      # (B, S*I)
    x2d = x.reshape(B * S, I)                                        # (B*S, I)

    n_in = 10
    return pl.pallas_call(
        attn_decoder_kernel,
        out_shape=jax.ShapeDtypeStruct((B, O), x.dtype),
        in_specs=[pl.BlockSpec(memory_space=pltpu.MemorySpace.VMEM)] * n_in,
        out_specs=pl.BlockSpec(memory_space=pltpu.MemorySpace.VMEM),
    )(enc_flat, x2d, w_av, wih0, b0, wm, b1, whh1, wfc, bfc)


def reference_forward(x, params):
    """Pure-JAX replica of the PyTorch forward (for correctness checking)."""
    B, S, I = x.shape
    H = params["w_hh0"].shape[1]
    enc_flat = x.reshape(B, -1)
    h0_init = jnp.zeros((B, H), jnp.float32)
    attn_in = jnp.concatenate([enc_flat, h0_init], axis=1)
    energy = attn_in @ params["w_attn"].T
    logits = energy @ params["w_v"].T
    w = jax.nn.softmax(logits, axis=1)
    attn_applied = jnp.einsum('bs,bsi->bi', w, x)
    seq = jnp.concatenate([attn_applied[:, None, :], x], axis=1)     # (B, S+1, I)

    def cell(x_t, h, c, wih, whh, bih, bhh):
        gates = x_t @ wih.T + bih + h @ whh.T + bhh
        i, f, g, o = jnp.split(gates, 4, axis=1)
        i = jax.nn.sigmoid(i); f = jax.nn.sigmoid(f)
        g = jnp.tanh(g); o = jax.nn.sigmoid(o)
        c = f * c + i * g
        h = o * jnp.tanh(c)
        return h, c

    h0 = c0 = h1 = c1 = jnp.zeros((B, H), jnp.float32)
    for t in range(S + 1):
        h0, c0 = cell(seq[:, t], h0, c0,
                      params["w_ih0"], params["w_hh0"],
                      params["b_ih0"], params["b_hh0"])
        h1, c1 = cell(h0, h1, c1,
                      params["w_ih1"], params["w_hh1"],
                      params["b_ih1"], params["b_hh1"])
    return h1 @ params["w_fc"].T + params["b_fc"]


if __name__ == "__main__":
    # Module config: input_size=4, hidden_size=32, output_size=4,
    #                num_layers=2, sequence_length=8, dropout=0.0
    B, S, I, H, O = 2, 8, 4, 32, 4

    key = jax.random.PRNGKey(0)
    k_x, k_p = jax.random.split(key)
    x = jax.random.normal(k_x, (B, S, I), dtype=jnp.float32)
    params = init_params(k_p, input_size=I, hidden_size=H,
                         output_size=O, sequence_length=S)

    out = jax.jit(attn_decoder_forward)(x, params)
    out = jax.block_until_ready(out)

    ref = reference_forward(x, params)
    assert out.shape == (B, O)
    assert jnp.allclose(out, ref, rtol=1e-3, atol=1e-4), (out, ref)

    print("KERNEL_OK")
</pallas_src>

<mosaic_0001>
module attributes {stable_mosaic.version = 11 : i64} {
  func.func @attn_decoder_kernel(%arg0: memref<2x32xf32, #tpu.memory_space<vmem>>, %arg1: memref<16x4xf32, #tpu.memory_space<vmem>>, %arg2: memref<32x8xf32, #tpu.memory_space<vmem>>, %arg3: memref<4x128xf32, #tpu.memory_space<vmem>>, %arg4: memref<1x128xf32, #tpu.memory_space<vmem>>, %arg5: memref<32x256xf32, #tpu.memory_space<vmem>>, %arg6: memref<1x128xf32, #tpu.memory_space<vmem>>, %arg7: memref<32x128xf32, #tpu.memory_space<vmem>>, %arg8: memref<32x4xf32, #tpu.memory_space<vmem>>, %arg9: memref<1x4xf32, #tpu.memory_space<vmem>>, %arg10: memref<2x4xf32, #tpu.memory_space<vmem>>) attributes {dimension_semantics = [], scalar_prefetch = 0 : i64, scratch_operands = 0 : i64, tpu.core_type = #tpu.core_type<tc>} {
    %c0 = arith.constant 0 : index
    %c0_0 = arith.constant 0 : index
    %0 = vector.load %arg0[%c0, %c0_0] : memref<2x32xf32, #tpu.memory_space<vmem>>, vector<2x32xf32>
    %c0_1 = arith.constant 0 : index
    %c0_2 = arith.constant 0 : index
    %1 = vector.load %arg2[%c0_1, %c0_2] : memref<32x8xf32, #tpu.memory_space<vmem>>, vector<32x8xf32>
    %cst = arith.constant dense<0.000000e+00> : vector<2x8xf32>
    %2 = tpu.matmul %0, %1, %cst {dimension_numbers = #tpu.dot_dimension_numbers<[1], [0], [0], [1], [0, 0, 1, 1], [], []>} : vector<2x32xf32>, vector<32x8xf32>, vector<2x8xf32> -> vector<2x8xf32>
    %cst_3 = arith.constant dense<0xFF800000> : vector<2xf32>
    %3 = vector.multi_reduction <maximumf>, %2, %cst_3 [1] : vector<2x8xf32> to vector<2xf32>
    %4 = vector.shape_cast %3 : vector<2xf32> to vector<2x1xf32>
    %5 = vector.broadcast %4 : vector<2x1xf32> to vector<2x8xf32>
    %6 = arith.subf %2, %5 : vector<2x8xf32>
    %7 = math.exp %6 : vector<2x8xf32>
    %cst_4 = arith.constant dense<0.000000e+00> : vector<2xf32>
    %8 = vector.multi_reduction <add>, %7, %cst_4 [1] : vector<2x8xf32> to vector<2xf32>
    %9 = vector.shape_cast %8 : vector<2xf32> to vector<2x1xf32>
    %10 = vector.broadcast %9 : vector<2x1xf32> to vector<2x8xf32>
    %11 = arith.divf %7, %10 : vector<2x8xf32>
    %c0_5 = arith.constant 0 : index
    %c0_6 = arith.constant 0 : index
    %12 = vector.load %arg4[%c0_5, %c0_6] : memref<1x128xf32, #tpu.memory_space<vmem>>, vector<1x128xf32>
    %c0_7 = arith.constant 0 : index
    %c0_8 = arith.constant 0 : index
    %13 = vector.load %arg6[%c0_7, %c0_8] : memref<1x128xf32, #tpu.memory_space<vmem>>, vector<1x128xf32>
    %c0_9 = arith.constant 0 : index
    %c0_10 = arith.constant 0 : index
    %14 = vector.load %arg1[%c0_9, %c0_10] : memref<16x4xf32, #tpu.memory_space<vmem>>, vector<16x4xf32>
    %c0_11 = arith.constant 0 : index
    %c0_12 = arith.constant 0 : index
    %15 = vector.load %arg3[%c0_11, %c0_12] : memref<4x128xf32, #tpu.memory_space<vmem>>, vector<4x128xf32>
    %cst_13 = arith.constant dense<0.000000e+00> : vector<16x128xf32>
    %16 = tpu.matmul %14, %15, %cst_13 {dimension_numbers = #tpu.dot_dimension_numbers<[1], [0], [0], [1], [0, 0, 1, 1], [], []>} : vector<16x4xf32>, vector<4x128xf32>, vector<16x128xf32> -> vector<16x128xf32>
    %17 = vector.shape_cast %16 : vector<16x128xf32> to vector<2x8x128xf32>
    %18 = vector.shape_cast %11 : vector<2x8xf32> to vector<2x8x1xf32>
    %19 = vector.broadcast %18 : vector<2x8x1xf32> to vector<2x8x128xf32>
    %20 = arith.mulf %19, %17 : vector<2x8x128xf32>
    %cst_14 = arith.constant dense<0.000000e+00> : vector<2x128xf32>
    %21 = vector.multi_reduction <add>, %20, %cst_14 [1] : vector<2x8x128xf32> to vector<2x128xf32>
    %22 = tpu.iota {dimensions = array<i32: 1>} : vector<2x128xi32>
    %c64_i32 = arith.constant 64 : i32
    %23 = vector.broadcast %c64_i32 : i32 to vector<2x128xi32>
    %24 = arith.cmpi sge, %22, %23 : vector<2x128xi32>
    %c96_i32 = arith.constant 96 : i32
    %25 = vector.broadcast %c96_i32 : i32 to vector<2x128xi32>
    %26 = arith.cmpi slt, %22, %25 : vector<2x128xi32>
    %27 = arith.andi %24, %26 : vector<2x128xi1>
    %c0_15 = arith.constant 0 : index
    %c0_16 = arith.constant 0 : index
    %28 = vector.load %arg5[%c0_15, %c0_16] : memref<32x256xf32, #tpu.memory_space<vmem>>, vector<32x256xf32>
    %c0_17 = arith.constant 0 : index
    %c0_18 = arith.constant 0 : index
    %29 = vector.load %arg7[%c0_17, %c0_18] : memref<32x128xf32, #tpu.memory_space<vmem>>, vector<32x128xf32>
    %cst_19 = arith.constant 0.000000e+00 : f32
    %30 = vector.broadcast %cst_19 : f32 to vector<2x32xf32>
    %31 = vector.broadcast %12 : vector<1x128xf32> to vector<2x128xf32>
    %32 = arith.addf %21, %31 : vector<2x128xf32>
    %33 = math.tanh %32 : vector<2x128xf32>
    %34 = arith.negf %32 : vector<2x128xf32>
    %35 = math.exp %34 : vector<2x128xf32>
    %cst_20 = arith.constant 1.000000e+00 : f32
    %36 = vector.broadcast %cst_20 : f32 to vector<2x128xf32>
    %37 = arith.addf %36, %35 : vector<2x128xf32>
    %38 = arith.divf %36, %37 : vector<2x128xf32>
    %39 = arith.select %27, %33, %38 : vector<2x128xi1>, vector<2x128xf32>
    %40 = vector.extract_strided_slice %39 {offsets = [0, 0], sizes = [2, 32], strides = [1, 1]} : vector<2x128xf32> to vector<2x32xf32>
    %41 = vector.extract_strided_slice %39 {offsets = [0, 32], sizes = [2, 32], strides = [1, 1]} : vector<2x128xf32> to vector<2x32xf32>
    %42 = vector.extract_strided_slice %39 {offsets = [0, 64], sizes = [2, 32], strides = [1, 1]} : vector<2x128xf32> to vector<2x32xf32>
    %43 = vector.extract_strided_slice %39 {offsets = [0, 96], sizes = [2, 32], strides = [1, 1]} : vector<2x128xf32> to vector<2x32xf32>
    %44 = arith.mulf %41, %30 : vector<2x32xf32>
    %45 = arith.mulf %40, %42 : vector<2x32xf32>
    %46 = arith.addf %44, %45 : vector<2x32xf32>
    %47 = math.tanh %46 : vector<2x32xf32>
    %48 = arith.mulf %43, %47 : vector<2x32xf32>
    %cst_21 = arith.constant dense<0.000000e+00> : vector<2x256xf32>
    %49 = tpu.matmul %48, %28, %cst_21 {dimension_numbers = #tpu.dot_dimension_numbers<[1], [0], [0], [1], [0, 0, 1, 1], [], []>} : vector<2x32xf32>, vector<32x256xf32>, vector<2x256xf32> -> vector<2x256xf32>
    %50 = vector.extract_strided_slice %49 {offsets = [0, 128], sizes = [2, 128], strides = [1, 1]} : vector<2x256xf32> to vector<2x128xf32>
    %cst_22 = arith.constant dense<0.000000e+00> : vector<2x128xf32>
    %51 = tpu.matmul %30, %29, %cst_22 {dimension_numbers = #tpu.dot_dimension_numbers<[1], [0], [0], [1], [0, 0, 1, 1], [], []>} : vector<2x32xf32>, vector<32x128xf32>, vector<2x128xf32> -> vector<2x128xf32>
    %52 = arith.addf %50, %51 : vector<2x128xf32>
    %53 = vector.broadcast %13 : vector<1x128xf32> to vector<2x128xf32>
    %54 = arith.addf %52, %53 : vector<2x128xf32>
    %55 = math.tanh %54 : vector<2x128xf32>
    %56 = arith.negf %54 : vector<2x128xf32>
    %57 = math.exp %56 : vector<2x128xf32>
    %cst_23 = arith.constant 1.000000e+00 : f32
    %58 = vector.broadcast %cst_23 : f32 to vector<2x128xf32>
    %59 = arith.addf %58, %57 : vector<2x128xf32>
    %60 = arith.divf %58, %59 : vector<2x128xf32>
    %61 = arith.select %27, %55, %60 : vector<2x128xi1>, vector<2x128xf32>
    %62 = vector.extract_strided_slice %61 {offsets = [0, 0], sizes = [2, 32], strides = [1, 1]} : vector<2x128xf32> to vector<2x32xf32>
    %63 = vector.extract_strided_slice %61 {offsets = [0, 32], sizes = [2, 32], strides = [1, 1]} : vector<2x128xf32> to vector<2x32xf32>
    %64 = vector.extract_strided_slice %61 {offsets = [0, 64], sizes = [2, 32], strides = [1, 1]} : vector<2x128xf32> to vector<2x32xf32>
    %65 = vector.extract_strided_slice %61 {offsets = [0, 96], sizes = [2, 32], strides = [1, 1]} : vector<2x128xf32> to vector<2x32xf32>
    %66 = arith.mulf %63, %30 : vector<2x32xf32>
    %67 = arith.mulf %62, %64 : vector<2x32xf32>
    %68 = arith.addf %66, %67 : vector<2x32xf32>
    %69 = math.tanh %68 : vector<2x32xf32>
    %70 = arith.mulf %65, %69 : vector<2x32xf32>
    %71 = vector.extract_strided_slice %17 {offsets = [0, 0, 0], sizes = [2, 1, 128], strides = [1, 1, 1]} : vector<2x8x128xf32> to vector<2x1x128xf32>
    %72 = vector.shape_cast %71 : vector<2x1x128xf32> to vector<2x128xf32>
    %73 = vector.extract_strided_slice %49 {offsets = [0, 0], sizes = [2, 128], strides = [1, 1]} : vector<2x256xf32> to vector<2x128xf32>
    %74 = arith.addf %72, %73 : vector<2x128xf32>
    %75 = vector.broadcast %12 : vector<1x128xf32> to vector<2x128xf32>
    %76 = arith.addf %74, %75 : vector<2x128xf32>
    %77 = math.tanh %76 : vector<2x128xf32>
    %78 = arith.negf %76 : vector<2x128xf32>
    %79 = math.exp %78 : vector<2x128xf32>
    %cst_24 = arith.constant 1.000000e+00 : f32
    %80 = vector.broadcast %cst_24 : f32 to vector<2x128xf32>
    %81 = arith.addf %80, %79 : vector<2x128xf32>
    %82 = arith.divf %80, %81 : vector<2x128xf32>
    %83 = arith.select %27, %77, %82 : vector<2x128xi1>, vector<2x128xf32>
    %84 = vector.extract_strided_slice %83 {offsets = [0, 0], sizes = [2, 32], strides = [1, 1]} : vector<2x128xf32> to vector<2x32xf32>
    %85 = vector.extract_strided_slice %83 {offsets = [0, 32], sizes = [2, 32], strides = [1, 1]} : vector<2x128xf32> to vector<2x32xf32>
    %86 = vector.extract_strided_slice %83 {offsets = [0, 64], sizes = [2, 32], strides = [1, 1]} : vector<2x128xf32> to vector<2x32xf32>
    %87 = vector.extract_strided_slice %83 {offsets = [0, 96], sizes = [2, 32], strides = [1, 1]} : vector<2x128xf32> to vector<2x32xf32>
    %88 = arith.mulf %85, %46 : vector<2x32xf32>
    %89 = arith.mulf %84, %86 : vector<2x32xf32>
    %90 = arith.addf %88, %89 : vector<2x32xf32>
    %91 = math.tanh %90 : vector<2x32xf32>
    %92 = arith.mulf %87, %91 : vector<2x32xf32>
    %cst_25 = arith.constant dense<0.000000e+00> : vector<2x256xf32>
    %93 = tpu.matmul %92, %28, %cst_25 {dimension_numbers = #tpu.dot_dimension_numbers<[1], [0], [0], [1], [0, 0, 1, 1], [], []>} : vector<2x32xf32>, vector<32x256xf32>, vector<2x256xf32> -> vector<2x256xf32>
    %94 = vector.extract_strided_slice %93 {offsets = [0, 128], sizes = [2, 128], strides = [1, 1]} : vector<2x256xf32> to vector<2x128xf32>
    %cst_26 = arith.constant dense<0.000000e+00> : vector<2x128xf32>
    %95 = tpu.matmul %70, %29, %cst_26 {dimension_numbers = #tpu.dot_dimension_numbers<[1], [0], [0], [1], [0, 0, 1, 1], [], []>} : vector<2x32xf32>, vector<32x128xf32>, vector<2x128xf32> -> vector<2x128xf32>
    %96 = arith.addf %94, %95 : vector<2x128xf32>
    %97 = vector.broadcast %13 : vector<1x128xf32> to vector<2x128xf32>
    %98 = arith.addf %96, %97 : vector<2x128xf32>
    %99 = math.tanh %98 : vector<2x128xf32>
    %100 = arith.negf %98 : vector<2x128xf32>
    %101 = math.exp %100 : vector<2x128xf32>
    %cst_27 = arith.constant 1.000000e+00 : f32
    %102 = vector.broadcast %cst_27 : f32 to vector<2x128xf32>
    %103 = arith.addf %102, %101 : vector<2x128xf32>
    %104 = arith.divf %102, %103 : vector<2x128xf32>
    %105 = arith.select %27, %99, %104 : vector<2x128xi1>, vector<2x128xf32>
    %106 = vector.extract_strided_slice %105 {offsets = [0, 0], sizes = [2, 32], strides = [1, 1]} : vector<2x128xf32> to vector<2x32xf32>
    %107 = vector.extract_strided_slice %105 {offsets = [0, 32], sizes = [2, 32], strides = [1, 1]} : vector<2x128xf32> to vector<2x32xf32>
    %108 = vector.extract_strided_slice %105 {offsets = [0, 64], sizes = [2, 32], strides = [1, 1]} : vector<2x128xf32> to vector<2x32xf32>
    %109 = vector.extract_strided_slice %105 {offsets = [0, 96], sizes = [2, 32], strides = [1, 1]} : vector<2x128xf32> to vector<2x32xf32>
    %110 = arith.mulf %107, %68 : vector<2x32xf32>
    %111 = arith.mulf %106, %108 : vector<2x32xf32>
    %112 = arith.addf %110, %111 : vector<2x32xf32>
    %113 = math.tanh %112 : vector<2x32xf32>
    %114 = arith.mulf %109, %113 : vector<2x32xf32>
    %115 = vector.extract_strided_slice %17 {offsets = [0, 1, 0], sizes = [2, 1, 128], strides = [1, 1, 1]} : vector<2x8x128xf32> to vector<2x1x128xf32>
    %116 = vector.shape_cast %115 : vector<2x1x128xf32> to vector<2x128xf32>
    %117 = vector.extract_strided_slice %93 {offsets = [0, 0], sizes = [2, 128], strides = [1, 1]} : vector<2x256xf32> to vector<2x128xf32>
    %118 = arith.addf %116, %117 : vector<2x128xf32>
    %119 = vector.broadcast %12 : vector<1x128xf32> to vector<2x128xf32>
    %120 = arith.addf %118, %119 : vector<2x128xf32>
    %121 = math.tanh %120 : vector<2x128xf32>
    %122 = arith.negf %120 : vector<2x128xf32>
    %123 = math.exp %122 : vector<2x128xf32>
    %cst_28 = arith.constant 1.000000e+00 : f32
    %124 = vector.broadcast %cst_28 : f32 to vector<2x128xf32>
    %125 = arith.addf %124, %123 : vector<2x128xf32>
    %126 = arith.divf %124, %125 : vector<2x128xf32>
    %127 = arith.select %27, %121, %126 : vector<2x128xi1>, vector<2x128xf32>
    %128 = vector.extract_strided_slice %127 {offsets = [0, 0], sizes = [2, 32], strides = [1, 1]} : vector<2x128xf32> to vector<2x32xf32>
    %129 = vector.extract_strided_slice %127 {offsets = [0, 32], sizes = [2, 32], strides = [1, 1]} : vector<2x128xf32> to vector<2x32xf32>
    %130 = vector.extract_strided_slice %127 {offsets = [0, 64], sizes = [2, 32], strides = [1, 1]} : vector<2x128xf32> to vector<2x32xf32>
    %131 = vector.extract_strided_slice %127 {offsets = [0, 96], sizes = [2, 32], strides = [1, 1]} : vector<2x128xf32> to vector<2x32xf32>
    %132 = arith.mulf %129, %90 : vector<2x32xf32>
    %133 = arith.mulf %128, %130 : vector<2x32xf32>
    %134 = arith.addf %132, %133 : vector<2x32xf32>
    %135 = math.tanh %134 : vector<2x32xf32>
    %136 = arith.mulf %131, %135 : vector<2x32xf32>
    %cst_29 = arith.constant dense<0.000000e+00> : vector<2x256xf32>
    %137 = tpu.matmul %136, %28, %cst_29 {dimension_numbers = #tpu.dot_dimension_numbers<[1], [0], [0], [1], [0, 0, 1, 1], [], []>} : vector<2x32xf32>, vector<32x256xf32>, vector<2x256xf32> -> vector<2x256xf32>
    %138 = vector.extract_strided_slice %137 {offsets = [0, 128], sizes = [2, 128], strides = [1, 1]} : vector<2x256xf32> to vector<2x128xf32>
    %cst_30 = arith.constant dense<0.000000e+00> : vector<2x128xf32>
    %139 = tpu.matmul %114, %29, %cst_30 {dimension_numbers = #tpu.dot_dimension_numbers<[1], [0], [0], [1], [0, 0, 1, 1], [], []>} : vector<2x32xf32>, vector<32x128xf32>, vector<2x128xf32> -> vector<2x128xf32>
    %140 = arith.addf %138, %139 : vector<2x128xf32>
    %141 = vector.broadcast %13 : vector<1x128xf32> to vector<2x128xf32>
    %142 = arith.addf %140, %141 : vector<2x128xf32>
    %143 = math.tanh %142 : vector<2x128xf32>
    %144 = arith.negf %142 : vector<2x128xf32>
    %145 = math.exp %144 : vector<2x128xf32>
    %cst_31 = arith.constant 1.000000e+00 : f32
    %146 = vector.broadcast %cst_31 : f32 to vector<2x128xf32>
    %147 = arith.addf %146, %145 : vector<2x128xf32>
    %148 = arith.divf %146, %147 : vector<2x128xf32>
    %149 = arith.select %27, %143, %148 : vector<2x128xi1>, vector<2x128xf32>
    %150 = vector.extract_strided_slice %149 {offsets = [0, 0], sizes = [2, 32], strides = [1, 1]} : vector<2x128xf32> to vector<2x32xf32>
    %151 = vector.extract_strided_slice %149 {offsets = [0, 32], sizes = [2, 32], strides = [1, 1]} : vector<2x128xf32> to vector<2x32xf32>
    %152 = vector.extract_strided_slice %149 {offsets = [0, 64], sizes = [2, 32], strides = [1, 1]} : vector<2x128xf32> to vector<2x32xf32>
    %153 = vector.extract_strided_slice %149 {offsets = [0, 96], sizes = [2, 32], strides = [1, 1]} : vector<2x128xf32> to vector<2x32xf32>
    %154 = arith.mulf %151, %112 : vector<2x32xf32>
    %155 = arith.mulf %150, %152 : vector<2x32xf32>
    %156 = arith.addf %154, %155 : vector<2x32xf32>
    %157 = math.tanh %156 : vector<2x32xf32>
    %158 = arith.mulf %153, %157 : vector<2x32xf32>
    %159 = vector.extract_strided_slice %17 {offsets = [0, 2, 0], sizes = [2, 1, 128], strides = [1, 1, 1]} : vector<2x8x128xf32> to vector<2x1x128xf32>
    %160 = vector.shape_cast %159 : vector<2x1x128xf32> to vector<2x128xf32>
    %161 = vector.extract_strided_slice %137 {offsets = [0, 0], sizes = [2, 128], strides = [1, 1]} : vector<2x256xf32> to vector<2x128xf32>
    %162 = arith.addf %160, %161 : vector<2x128xf32>
    %163 = vector.broadcast %12 : vector<1x128xf32> to vector<2x128xf32>
    %164 = arith.addf %162, %163 : vector<2x128xf32>
    %165 = math.tanh %164 : vector<2x128xf32>
    %166 = arith.negf %164 : vector<2x128xf32>
    %167 = math.exp %166 : vector<2x128xf32>
    %cst_32 = arith.constant 1.000000e+00 : f32
    %168 = vector.broadcast %cst_32 : f32 to vector<2x128xf32>
    %169 = arith.addf %168, %167 : vector<2x128xf32>
    %170 = arith.divf %168, %169 : vector<2x128xf32>
    %171 = arith.select %27, %165, %170 : vector<2x128xi1>, vector<2x128xf32>
    %172 = vector.extract_strided_slice %171 {offsets = [0, 0], sizes = [2, 32], strides = [1, 1]} : vector<2x128xf32> to vector<2x32xf32>
    %173 = vector.extract_strided_slice %171 {offsets = [0, 32], sizes = [2, 32], strides = [1, 1]} : vector<2x128xf32> to vector<2x32xf32>
    %174 = vector.extract_strided_slice %171 {offsets = [0, 64], sizes = [2, 32], strides = [1, 1]} : vector<2x128xf32> to vector<2x32xf32>
    %175 = vector.extract_strided_slice %171 {offsets = [0, 96], sizes = [2, 32], strides = [1, 1]} : vector<2x128xf32> to vector<2x32xf32>
    %176 = arith.mulf %173, %134 : vector<2x32xf32>
    %177 = arith.mulf %172, %174 : vector<2x32xf32>
    %178 = arith.addf %176, %177 : vector<2x32xf32>
    %179 = math.tanh %178 : vector<2x32xf32>
    %180 = arith.mulf %175, %179 : vector<2x32xf32>
    %cst_33 = arith.constant dense<0.000000e+00> : vector<2x256xf32>
    %181 = tpu.matmul %180, %28, %cst_33 {dimension_numbers = #tpu.dot_dimension_numbers<[1], [0], [0], [1], [0, 0, 1, 1], [], []>} : vector<2x32xf32>, vector<32x256xf32>, vector<2x256xf32> -> vector<2x256xf32>
    %182 = vector.extract_strided_slice %181 {offsets = [0, 128], sizes = [2, 128], strides = [1, 1]} : vector<2x256xf32> to vector<2x128xf32>
    %cst_34 = arith.constant dense<0.000000e+00> : vector<2x128xf32>
    %183 = tpu.matmul %158, %29, %cst_34 {dimension_numbers = #tpu.dot_dimension_numbers<[1], [0], [0], [1], [0, 0, 1, 1], [], []>} : vector<2x32xf32>, vector<32x128xf32>, vector<2x128xf32> -> vector<2x128xf32>
    %184 = arith.addf %182, %183 : vector<2x128xf32>
    %185 = vector.broadcast %13 : vector<1x128xf32> to vector<2x128xf32>
    %186 = arith.addf %184, %185 : vector<2x128xf32>
    %187 = math.tanh %186 : vector<2x128xf32>
    %188 = arith.negf %186 : vector<2x128xf32>
    %189 = math.exp %188 : vector<2x128xf32>
    %cst_35 = arith.constant 1.000000e+00 : f32
    %190 = vector.broadcast %cst_35 : f32 to vector<2x128xf32>
    %191 = arith.addf %190, %189 : vector<2x128xf32>
    %192 = arith.divf %190, %191 : vector<2x128xf32>
    %193 = arith.select %27, %187, %192 : vector<2x128xi1>, vector<2x128xf32>
    %194 = vector.extract_strided_slice %193 {offsets = [0, 0], sizes = [2, 32], strides = [1, 1]} : vector<2x128xf32> to vector<2x32xf32>
    %195 = vector.extract_strided_slice %193 {offsets = [0, 32], sizes = [2, 32], strides = [1, 1]} : vector<2x128xf32> to vector<2x32xf32>
    %196 = vector.extract_strided_slice %193 {offsets = [0, 64], sizes = [2, 32], strides = [1, 1]} : vector<2x128xf32> to vector<2x32xf32>
    %197 = vector.extract_strided_slice %193 {offsets = [0, 96], sizes = [2, 32], strides = [1, 1]} : vector<2x128xf32> to vector<2x32xf32>
    %198 = arith.mulf %195, %156 : vector<2x32xf32>
    %199 = arith.mulf %194, %196 : vector<2x32xf32>
    %200 = arith.addf %198, %199 : vector<2x32xf32>
    %201 = math.tanh %200 : vector<2x32xf32>
    %202 = arith.mulf %197, %201 : vector<2x32xf32>
    %203 = vector.extract_strided_slice %17 {offsets = [0, 3, 0], sizes = [2, 1, 128], strides = [1, 1, 1]} : vector<2x8x128xf32> to vector<2x1x128xf32>
    %204 = vector.shape_cast %203 : vector<2x1x128xf32> to vector<2x128xf32>
    %205 = vector.extract_strided_slice %181 {offsets = [0, 0], sizes = [2, 128], strides = [1, 1]} : vector<2x256xf32> to vector<2x128xf32>
    %206 = arith.addf %204, %205 : vector<2x128xf32>
    %207 = vector.broadcast %12 : vector<1x128xf32> to vector<2x128xf32>
    %208 = arith.addf %206, %207 : vector<2x128xf32>
    %209 = math.tanh %208 : vector<2x128xf32>
    %210 = arith.negf %208 : vector<2x128xf32>
    %211 = math.exp %210 : vector<2x128xf32>
    %cst_36 = arith.constant 1.000000e+00 : f32
    %212 = vector.broadcast %cst_36 : f32 to vector<2x128xf32>
    %213 = arith.addf %212, %211 : vector<2x128xf32>
    %214 = arith.divf %212, %213 : vector<2x128xf32>
    %215 = arith.select %27, %209, %214 : vector<2x128xi1>, vector<2x128xf32>
    %216 = vector.extract_strided_slice %215 {offsets = [0, 0], sizes = [2, 32], strides = [1, 1]} : vector<2x128xf32> to vector<2x32xf32>
    %217 = vector.extract_strided_slice %215 {offsets = [0, 32], sizes = [2, 32], strides = [1, 1]} : vector<2x128xf32> to vector<2x32xf32>
    %218 = vector.extract_strided_slice %215 {offsets = [0, 64], sizes = [2, 32], strides = [1, 1]} : vector<2x128xf32> to vector<2x32xf32>
    %219 = vector.extract_strided_slice %215 {offsets = [0, 96], sizes = [2, 32], strides = [1, 1]} : vector<2x128xf32> to vector<2x32xf32>
    %220 = arith.mulf %217, %178 : vector<2x32xf32>
    %221 = arith.mulf %216, %218 : vector<2x32xf32>
    %222 = arith.addf %220, %221 : vector<2x32xf32>
    %223 = math.tanh %222 : vector<2x32xf32>
    %224 = arith.mulf %219, %223 : vector<2x32xf32>
    %cst_37 = arith.constant dense<0.000000e+00> : vector<2x256xf32>
    %225 = tpu.matmul %224, %28, %cst_37 {dimension_numbers = #tpu.dot_dimension_numbers<[1], [0], [0], [1], [0, 0, 1, 1], [], []>} : vector<2x32xf32>, vector<32x256xf32>, vector<2x256xf32> -> vector<2x256xf32>
    %226 = vector.extract_strided_slice %225 {offsets = [0, 128], sizes = [2, 128], strides = [1, 1]} : vector<2x256xf32> to vector<2x128xf32>
    %cst_38 = arith.constant dense<0.000000e+00> : vector<2x128xf32>
    %227 = tpu.matmul %202, %29, %cst_38 {dimension_numbers = #tpu.dot_dimension_numbers<[1], [0], [0], [1], [0, 0, 1, 1], [], []>} : vector<2x32xf32>, vector<32x128xf32>, vector<2x128xf32> -> vector<2x128xf32>
    %228 = arith.addf %226, %227 : vector<2x128xf32>
    %229 = vector.broadcast %13 : vector<1x128xf32> to vector<2x128xf32>
    %230 = arith.addf %228, %229 : vector<2x128xf32>
    %231 = math.tanh %230 : vector<2x128xf32>
    %232 = arith.negf %230 : vector<2x128xf32>
    %233 = math.exp %232 : vector<2x128xf32>
    %cst_39 = arith.constant 1.000000e+00 : f32
    %234 = vector.broadcast %cst_39 : f32 to vector<2x128xf32>
    %235 = arith.addf %234, %233 : vector<2x128xf32>
    %236 = arith.divf %234, %235 : vector<2x128xf32>
    %237 = arith.select %27, %231, %236 : vector<2x128xi1>, vector<2x128xf32>
    %238 = vector.extract_strided_slice %237 {offsets = [0, 0], sizes = [2, 32], strides = [1, 1]} : vector<2x128xf32> to vector<2x32xf32>
    %239 = vector.extract_strided_slice %237 {offsets = [0, 32], sizes = [2, 32], strides = [1, 1]} : vector<2x128xf32> to vector<2x32xf32>
    %240 = vector.extract_strided_slice %237 {offsets = [0, 64], sizes = [2, 32], strides = [1, 1]} : vector<2x128xf32> to vector<2x32xf32>
    %241 = vector.extract_strided_slice %237 {offsets = [0, 96], sizes = [2, 32], strides = [1, 1]} : vector<2x128xf32> to vector<2x32xf32>
    %242 = arith.mulf %239, %200 : vector<2x32xf32>
    %243 = arith.mulf %238, %240 : vector<2x32xf32>
    %244 = arith.addf %242, %243 : vector<2x32xf32>
    %245 = math.tanh %244 : vector<2x32xf32>
    %246 = arith.mulf %241, %245 : vector<2x32xf32>
    %247 = vector.extract_strided_slice %17 {offsets = [0, 4, 0], sizes = [2, 1, 128], strides = [1, 1, 1]} : vector<2x8x128xf32> to vector<2x1x128xf32>
    %248 = vector.shape_cast %247 : vector<2x1x128xf32> to vector<2x128xf32>
    %249 = vector.extract_strided_slice %225 {offsets = [0, 0], sizes = [2, 128], strides = [1, 1]} : vector<2x256xf32> to vector<2x128xf32>
    %250 = arith.addf %248, %249 : vector<2x128xf32>
    %251 = vector.broadcast %12 : vector<1x128xf32> to vector<2x128xf32>
    %252 = arith.addf %250, %251 : vector<2x128xf32>
    %253 = math.tanh %252 : vector<2x128xf32>
    %254 = arith.negf %252 : vector<2x128xf32>
    %255 = math.exp %254 : vector<2x128xf32>
    %cst_40 = arith.constant 1.000000e+00 : f32
    %256 = vector.broadcast %cst_40 : f32 to vector<2x128xf32>
    %257 = arith.addf %256, %255 : vector<2x128xf32>
    %258 = arith.divf %256, %257 : vector<2x128xf32>
    %259 = arith.select %27, %253, %258 : vector<2x128xi1>, vector<2x128xf32>
    %260 = vector.extract_strided_slice %259 {offsets = [0, 0], sizes = [2, 32], strides = [1, 1]} : vector<2x128xf32> to vector<2x32xf32>
    %261 = vector.extract_strided_slice %259 {offsets = [0, 32], sizes = [2, 32], strides = [1, 1]} : vector<2x128xf32> to vector<2x32xf32>
    %262 = vector.extract_strided_slice %259 {offsets = [0, 64], sizes = [2, 32], strides = [1, 1]} : vector<2x128xf32> to vector<2x32xf32>
    %263 = vector.extract_strided_slice %259 {offsets = [0, 96], sizes = [2, 32], strides = [1, 1]} : vector<2x128xf32> to vector<2x32xf32>
    %264 = arith.mulf %261, %222 : vector<2x32xf32>
    %265 = arith.mulf %260, %262 : vector<2x32xf32>
    %266 = arith.addf %264, %265 : vector<2x32xf32>
    %267 = math.tanh %266 : vector<2x32xf32>
    %268 = arith.mulf %263, %267 : vector<2x32xf32>
    %cst_41 = arith.constant dense<0.000000e+00> : vector<2x256xf32>
    %269 = tpu.matmul %268, %28, %cst_41 {dimension_numbers = #tpu.dot_dimension_numbers<[1], [0], [0], [1], [0, 0, 1, 1], [], []>} : vector<2x32xf32>, vector<32x256xf32>, vector<2x256xf32> -> vector<2x256xf32>
    %270 = vector.extract_strided_slice %269 {offsets = [0, 128], sizes = [2, 128], strides = [1, 1]} : vector<2x256xf32> to vector<2x128xf32>
    %cst_42 = arith.constant dense<0.000000e+00> : vector<2x128xf32>
    %271 = tpu.matmul %246, %29, %cst_42 {dimension_numbers = #tpu.dot_dimension_numbers<[1], [0], [0], [1], [0, 0, 1, 1], [], []>} : vector<2x32xf32>, vector<32x128xf32>, vector<2x128xf32> -> vector<2x128xf32>
    %272 = arith.addf %270, %271 : vector<2x128xf32>
    %273 = vector.broadcast %13 : vector<1x128xf32> to vector<2x128xf32>
    %274 = arith.addf %272, %273 : vector<2x128xf32>
    %275 = math.tanh %274 : vector<2x128xf32>
    %276 = arith.negf %274 : vector<2x128xf32>
    %277 = math.exp %276 : vector<2x128xf32>
    %cst_43 = arith.constant 1.000000e+00 : f32
    %278 = vector.broadcast %cst_43 : f32 to vector<2x128xf32>
    %279 = arith.addf %278, %277 : vector<2x128xf32>
    %280 = arith.divf %278, %279 : vector<2x128xf32>
    %281 = arith.select %27, %275, %280 : vector<2x128xi1>, vector<2x128xf32>
    %282 = vector.extract_strided_slice %281 {offsets = [0, 0], sizes = [2, 32], strides = [1, 1]} : vector<2x128xf32> to vector<2x32xf32>
    %283 = vector.extract_strided_slice %281 {offsets = [0, 32], sizes = [2, 32], strides = [1, 1]} : vector<2x128xf32> to vector<2x32xf32>
    %284 = vector.extract_strided_slice %281 {offsets = [0, 64], sizes = [2, 32], strides = [1, 1]} : vector<2x128xf32> to vector<2x32xf32>
    %285 = vector.extract_strided_slice %281 {offsets = [0, 96], sizes = [2, 32], strides = [1, 1]} : vector<2x128xf32> to vector<2x32xf32>
    %286 = arith.mulf %283, %244 : vector<2x32xf32>
    %287 = arith.mulf %282, %284 : vector<2x32xf32>
    %288 = arith.addf %286, %287 : vector<2x32xf32>
    %289 = math.tanh %288 : vector<2x32xf32>
    %290 = arith.mulf %285, %289 : vector<2x32xf32>
    %291 = vector.extract_strided_slice %17 {offsets = [0, 5, 0], sizes = [2, 1, 128], strides = [1, 1, 1]} : vector<2x8x128xf32> to vector<2x1x128xf32>
    %292 = vector.shape_cast %291 : vector<2x1x128xf32> to vector<2x128xf32>
    %293 = vector.extract_strided_slice %269 {offsets = [0, 0], sizes = [2, 128], strides = [1, 1]} : vector<2x256xf32> to vector<2x128xf32>
    %294 = arith.addf %292, %293 : vector<2x128xf32>
    %295 = vector.broadcast %12 : vector<1x128xf32> to vector<2x128xf32>
    %296 = arith.addf %294, %295 : vector<2x128xf32>
    %297 = math.tanh %296 : vector<2x128xf32>
    %298 = arith.negf %296 : vector<2x128xf32>
    %299 = math.exp %298 : vector<2x128xf32>
    %cst_44 = arith.constant 1.000000e+00 : f32
    %300 = vector.broadcast %cst_44 : f32 to vector<2x128xf32>
    %301 = arith.addf %300, %299 : vector<2x128xf32>
    %302 = arith.divf %300, %301 : vector<2x128xf32>
    %303 = arith.select %27, %297, %302 : vector<2x128xi1>, vector<2x128xf32>
    %304 = vector.extract_strided_slice %303 {offsets = [0, 0], sizes = [2, 32], strides = [1, 1]} : vector<2x128xf32> to vector<2x32xf32>
    %305 = vector.extract_strided_slice %303 {offsets = [0, 32], sizes = [2, 32], strides = [1, 1]} : vector<2x128xf32> to vector<2x32xf32>
    %306 = vector.extract_strided_slice %303 {offsets = [0, 64], sizes = [2, 32], strides = [1, 1]} : vector<2x128xf32> to vector<2x32xf32>
    %307 = vector.extract_strided_slice %303 {offsets = [0, 96], sizes = [2, 32], strides = [1, 1]} : vector<2x128xf32> to vector<2x32xf32>
    %308 = arith.mulf %305, %266 : vector<2x32xf32>
    %309 = arith.mulf %304, %306 : vector<2x32xf32>
    %310 = arith.addf %308, %309 : vector<2x32xf32>
    %311 = math.tanh %310 : vector<2x32xf32>
    %312 = arith.mulf %307, %311 : vector<2x32xf32>
    %cst_45 = arith.constant dense<0.000000e+00> : vector<2x256xf32>
    %313 = tpu.matmul %312, %28, %cst_45 {dimension_numbers = #tpu.dot_dimension_numbers<[1], [0], [0], [1], [0, 0, 1, 1], [], []>} : vector<2x32xf32>, vector<32x256xf32>, vector<2x256xf32> -> vector<2x256xf32>
    %314 = vector.extract_strided_slice %313 {offsets = [0, 128], sizes = [2, 128], strides = [1, 1]} : vector<2x256xf32> to vector<2x128xf32>
    %cst_46 = arith.constant dense<0.000000e+00> : vector<2x128xf32>
    %315 = tpu.matmul %290, %29, %cst_46 {dimension_numbers = #tpu.dot_dimension_numbers<[1], [0], [0], [1], [0, 0, 1, 1], [], []>} : vector<2x32xf32>, vector<32x128xf32>, vector<2x128xf32> -> vector<2x128xf32>
    %316 = arith.addf %314, %315 : vector<2x128xf32>
    %317 = vector.broadcast %13 : vector<1x128xf32> to vector<2x128xf32>
    %318 = arith.addf %316, %317 : vector<2x128xf32>
    %319 = math.tanh %318 : vector<2x128xf32>
    %320 = arith.negf %318 : vector<2x128xf32>
    %321 = math.exp %320 : vector<2x128xf32>
    %cst_47 = arith.constant 1.000000e+00 : f32
    %322 = vector.broadcast %cst_47 : f32 to vector<2x128xf32>
    %323 = arith.addf %322, %321 : vector<2x128xf32>
    %324 = arith.divf %322, %323 : vector<2x128xf32>
    %325 = arith.select %27, %319, %324 : vector<2x128xi1>, vector<2x128xf32>
    %326 = vector.extract_strided_slice %325 {offsets = [0, 0], sizes = [2, 32], strides = [1, 1]} : vector<2x128xf32> to vector<2x32xf32>
    %327 = vector.extract_strided_slice %325 {offsets = [0, 32], sizes = [2, 32], strides = [1, 1]} : vector<2x128xf32> to vector<2x32xf32>
    %328 = vector.extract_strided_slice %325 {offsets = [0, 64], sizes = [2, 32], strides = [1, 1]} : vector<2x128xf32> to vector<2x32xf32>
    %329 = vector.extract_strided_slice %325 {offsets = [0, 96], sizes = [2, 32], strides = [1, 1]} : vector<2x128xf32> to vector<2x32xf32>
    %330 = arith.mulf %327, %288 : vector<2x32xf32>
    %331 = arith.mulf %326, %328 : vector<2x32xf32>
    %332 = arith.addf %330, %331 : vector<2x32xf32>
    %333 = math.tanh %332 : vector<2x32xf32>
    %334 = arith.mulf %329, %333 : vector<2x32xf32>
    %335 = vector.extract_strided_slice %17 {offsets = [0, 6, 0], sizes = [2, 1, 128], strides = [1, 1, 1]} : vector<2x8x128xf32> to vector<2x1x128xf32>
    %336 = vector.shape_cast %335 : vector<2x1x128xf32> to vector<2x128xf32>
    %337 = vector.extract_strided_slice %313 {offsets = [0, 0], sizes = [2, 128], strides = [1, 1]} : vector<2x256xf32> to vector<2x128xf32>
    %338 = arith.addf %336, %337 : vector<2x128xf32>
    %339 = vector.broadcast %12 : vector<1x128xf32> to vector<2x128xf32>
    %340 = arith.addf %338, %339 : vector<2x128xf32>
    %341 = math.tanh %340 : vector<2x128xf32>
    %342 = arith.negf %340 : vector<2x128xf32>
    %343 = math.exp %342 : vector<2x128xf32>
    %cst_48 = arith.constant 1.000000e+00 : f32
    %344 = vector.broadcast %cst_48 : f32 to vector<2x128xf32>
    %345 = arith.addf %344, %343 : vector<2x128xf32>
    %346 = arith.divf %344, %345 : vector<2x128xf32>
    %347 = arith.select %27, %341, %346 : vector<2x128xi1>, vector<2x128xf32>
    %348 = vector.extract_strided_slice %347 {offsets = [0, 0], sizes = [2, 32], strides = [1, 1]} : vector<2x128xf32> to vector<2x32xf32>
    %349 = vector.extract_strided_slice %347 {offsets = [0, 32], sizes = [2, 32], strides = [1, 1]} : vector<2x128xf32> to vector<2x32xf32>
    %350 = vector.extract_strided_slice %347 {offsets = [0, 64], sizes = [2, 32], strides = [1, 1]} : vector<2x128xf32> to vector<2x32xf32>
    %351 = vector.extract_strided_slice %347 {offsets = [0, 96], sizes = [2, 32], strides = [1, 1]} : vector<2x128xf32> to vector<2x32xf32>
    %352 = arith.mulf %349, %310 : vector<2x32xf32>
    %353 = arith.mulf %348, %350 : vector<2x32xf32>
    %354 = arith.addf %352, %353 : vector<2x32xf32>
    %355 = math.tanh %354 : vector<2x32xf32>
    %356 = arith.mulf %351, %355 : vector<2x32xf32>
    %cst_49 = arith.constant dense<0.000000e+00> : vector<2x256xf32>
    %357 = tpu.matmul %356, %28, %cst_49 {dimension_numbers = #tpu.dot_dimension_numbers<[1], [0], [0], [1], [0, 0, 1, 1], [], []>} : vector<2x32xf32>, vector<32x256xf32>, vector<2x256xf32> -> vector<2x256xf32>
    %358 = vector.extract_strided_slice %357 {offsets = [0, 128], sizes = [2, 128], strides = [1, 1]} : vector<2x256xf32> to vector<2x128xf32>
    %cst_50 = arith.constant dense<0.000000e+00> : vector<2x128xf32>
    %359 = tpu.matmul %334, %29, %cst_50 {dimension_numbers = #tpu.dot_dimension_numbers<[1], [0], [0], [1], [0, 0, 1, 1], [], []>} : vector<2x32xf32>, vector<32x128xf32>, vector<2x128xf32> -> vector<2x128xf32>
    %360 = arith.addf %358, %359 : vector<2x128xf32>
    %361 = vector.broadcast %13 : vector<1x128xf32> to vector<2x128xf32>
    %362 = arith.addf %360, %361 : vector<2x128xf32>
    %363 = math.tanh %362 : vector<2x128xf32>
    %364 = arith.negf %362 : vector<2x128xf32>
    %365 = math.exp %364 : vector<2x128xf32>
    %cst_51 = arith.constant 1.000000e+00 : f32
    %366 = vector.broadcast %cst_51 : f32 to vector<2x128xf32>
    %367 = arith.addf %366, %365 : vector<2x128xf32>
    %368 = arith.divf %366, %367 : vector<2x128xf32>
    %369 = arith.select %27, %363, %368 : vector<2x128xi1>, vector<2x128xf32>
    %370 = vector.extract_strided_slice %369 {offsets = [0, 0], sizes = [2, 32], strides = [1, 1]} : vector<2x128xf32> to vector<2x32xf32>
    %371 = vector.extract_strided_slice %369 {offsets = [0, 32], sizes = [2, 32], strides = [1, 1]} : vector<2x128xf32> to vector<2x32xf32>
    %372 = vector.extract_strided_slice %369 {offsets = [0, 64], sizes = [2, 32], strides = [1, 1]} : vector<2x128xf32> to vector<2x32xf32>
    %373 = vector.extract_strided_slice %369 {offsets = [0, 96], sizes = [2, 32], strides = [1, 1]} : vector<2x128xf32> to vector<2x32xf32>
    %374 = arith.mulf %371, %332 : vector<2x32xf32>
    %375 = arith.mulf %370, %372 : vector<2x32xf32>
    %376 = arith.addf %374, %375 : vector<2x32xf32>
    %377 = math.tanh %376 : vector<2x32xf32>
    %378 = arith.mulf %373, %377 : vector<2x32xf32>
    %379 = vector.extract_strided_slice %17 {offsets = [0, 7, 0], sizes = [2, 1, 128], strides = [1, 1, 1]} : vector<2x8x128xf32> to vector<2x1x128xf32>
    %380 = vector.shape_cast %379 : vector<2x1x128xf32> to vector<2x128xf32>
    %381 = vector.extract_strided_slice %357 {offsets = [0, 0], sizes = [2, 128], strides = [1, 1]} : vector<2x256xf32> to vector<2x128xf32>
    %382 = arith.addf %380, %381 : vector<2x128xf32>
    %383 = vector.broadcast %12 : vector<1x128xf32> to vector<2x128xf32>
    %384 = arith.addf %382, %383 : vector<2x128xf32>
    %385 = math.tanh %384 : vector<2x128xf32>
    %386 = arith.negf %384 : vector<2x128xf32>
    %387 = math.exp %386 : vector<2x128xf32>
    %cst_52 = arith.constant 1.000000e+00 : f32
    %388 = vector.broadcast %cst_52 : f32 to vector<2x128xf32>
    %389 = arith.addf %388, %387 : vector<2x128xf32>
    %390 = arith.divf %388, %389 : vector<2x128xf32>
    %391 = arith.select %27, %385, %390 : vector<2x128xi1>, vector<2x128xf32>
    %392 = vector.extract_strided_slice %391 {offsets = [0, 0], sizes = [2, 32], strides = [1, 1]} : vector<2x128xf32> to vector<2x32xf32>
    %393 = vector.extract_strided_slice %391 {offsets = [0, 32], sizes = [2, 32], strides = [1, 1]} : vector<2x128xf32> to vector<2x32xf32>
    %394 = vector.extract_strided_slice %391 {offsets = [0, 64], sizes = [2, 32], strides = [1, 1]} : vector<2x128xf32> to vector<2x32xf32>
    %395 = vector.extract_strided_slice %391 {offsets = [0, 96], sizes = [2, 32], strides = [1, 1]} : vector<2x128xf32> to vector<2x32xf32>
    %396 = arith.mulf %393, %354 : vector<2x32xf32>
    %397 = arith.mulf %392, %394 : vector<2x32xf32>
    %398 = arith.addf %396, %397 : vector<2x32xf32>
    %399 = math.tanh %398 : vector<2x32xf32>
    %400 = arith.mulf %395, %399 : vector<2x32xf32>
    %cst_53 = arith.constant dense<0.000000e+00> : vector<2x256xf32>
    %401 = tpu.matmul %400, %28, %cst_53 {dimension_numbers = #tpu.dot_dimension_numbers<[1], [0], [0], [1], [0, 0, 1, 1], [], []>} : vector<2x32xf32>, vector<32x256xf32>, vector<2x256xf32> -> vector<2x256xf32>
    %402 = vector.extract_strided_slice %401 {offsets = [0, 128], sizes = [2, 128], strides = [1, 1]} : vector<2x256xf32> to vector<2x128xf32>
    %cst_54 = arith.constant dense<0.000000e+00> : vector<2x128xf32>
    %403 = tpu.matmul %378, %29, %cst_54 {dimension_numbers = #tpu.dot_dimension_numbers<[1], [0], [0], [1], [0, 0, 1, 1], [], []>} : vector<2x32xf32>, vector<32x128xf32>, vector<2x128xf32> -> vector<2x128xf32>
    %404 = arith.addf %402, %403 : vector<2x128xf32>
    %405 = vector.broadcast %13 : vector<1x128xf32> to vector<2x128xf32>
    %406 = arith.addf %404, %405 : vector<2x128xf32>
    %407 = math.tanh %406 : vector<2x128xf32>
    %408 = arith.negf %406 : vector<2x128xf32>
    %409 = math.exp %408 : vector<2x128xf32>
    %cst_55 = arith.constant 1.000000e+00 : f32
    %410 = vector.broadcast %cst_55 : f32 to vector<2x128xf32>
    %411 = arith.addf %410, %409 : vector<2x128xf32>
    %412 = arith.divf %410, %411 : vector<2x128xf32>
    %413 = arith.select %27, %407, %412 : vector<2x128xi1>, vector<2x128xf32>
    %414 = vector.extract_strided_slice %413 {offsets = [0, 0], sizes = [2, 32], strides = [1, 1]} : vector<2x128xf32> to vector<2x32xf32>
    %415 = vector.extract_strided_slice %413 {offsets = [0, 32], sizes = [2, 32], strides = [1, 1]} : vector<2x128xf32> to vector<2x32xf32>
    %416 = vector.extract_strided_slice %413 {offsets = [0, 64], sizes = [2, 32], strides = [1, 1]} : vector<2x128xf32> to vector<2x32xf32>
    %417 = vector.extract_strided_slice %413 {offsets = [0, 96], sizes = [2, 32], strides = [1, 1]} : vector<2x128xf32> to vector<2x32xf32>
    %418 = arith.mulf %415, %376 : vector<2x32xf32>
    %419 = arith.mulf %414, %416 : vector<2x32xf32>
    %420 = arith.addf %418, %419 : vector<2x32xf32>
    %421 = math.tanh %420 : vector<2x32xf32>
    %422 = arith.mulf %417, %421 : vector<2x32xf32>
    %c0_56 = arith.constant 0 : index
    %c0_57 = arith.constant 0 : index
    %423 = vector.load %arg8[%c0_56, %c0_57] : memref<32x4xf32, #tpu.memory_space<vmem>>, vector<32x4xf32>
    %cst_58 = arith.constant dense<0.000000e+00> : vector<2x4xf32>
    %424 = tpu.matmul %422, %423, %cst_58 {dimension_numbers = #tpu.dot_dimension_numbers<[1], [0], [0], [1], [0, 0, 1, 1], [], []>} : vector<2x32xf32>, vector<32x4xf32>, vector<2x4xf32> -> vector<2x4xf32>
    %c0_59 = arith.constant 0 : index
    %c0_60 = arith.constant 0 : index
    %425 = vector.load %arg9[%c0_59, %c0_60] : memref<1x4xf32, #tpu.memory_space<vmem>>, vector<1x4xf32>
    %426 = vector.broadcast %425 : vector<1x4xf32> to vector<2x4xf32>
    %427 = arith.addf %424, %426 : vector<2x4xf32>
    %c0_61 = arith.constant 0 : index
    %c0_62 = arith.constant 0 : index
    %428 = vector.load %arg10[%c0_61, %c0_62] : memref<2x4xf32, #tpu.memory_space<vmem>>, vector<2x4xf32>
    tpu.vector_store %arg10[%c0_61, %c0_62], %427 {strides = array<i32>} : memref<2x4xf32, #tpu.memory_space<vmem>>, vector<2x4xf32>,
    return
  }
}

</mosaic_0001>

<llo_original>
// kernel: attn_decoder_forward.1
$region0: #{attn_decoder_forward.1}
  #allocation0 [shape = 'u32[]', space=smem, size = 0x4, offset = 0x4, fixed_abs, tag = 'smem constant byte address 0x4 - core index']
  #allocation1 [shape = 'u32[144,128]{1,0:T(1,128)}', space=vmem, size = 0x12000, scoped, tag = 'internal scratch']
  %s0 = inlined_call_operand.vmem [shape: f32[2,32], index: 0, kind: input, shape index: {}]
  %s1 = inlined_call_operand.vmem [shape: f32[16,4], index: 1, kind: input, shape index: {}]
  %s2 = inlined_call_operand.vmem [shape: f32[32,8], index: 2, kind: input, shape index: {}]
  %s3 = inlined_call_operand.vmem [shape: f32[4,128], index: 3, kind: input, shape index: {}]
  %s4 = inlined_call_operand.vmem [shape: f32[1,128], index: 4, kind: input, shape index: {}]
  %s5 = inlined_call_operand.vmem [shape: f32[32,256], index: 5, kind: input, shape index: {}]
  %s6 = inlined_call_operand.vmem [shape: f32[1,128], index: 6, kind: input, shape index: {}]
  %s7 = inlined_call_operand.vmem [shape: f32[32,128], index: 7, kind: input, shape index: {}]
  %s8 = inlined_call_operand.vmem [shape: f32[32,4], index: 8, kind: input, shape index: {}]
  %s9 = inlined_call_operand.vmem [shape: f32[1,4], index: 9, kind: input, shape index: {}]
  %s10 = inlined_call_operand.hbm [shape: f32[2,4], index: 10, kind: output, shape index: {}]
  %s11 = sld [smem:[#allocation0]]
  $region50: #{attn_decoder_forward.1} parent=0
    _
  %s13 = ssub.s32 1, %s11
  %s14 = scalar_select 0, %s13, %s11
  $region1: #{attn_decoder_forward.1} parent=0
    #allocation2 [shape = 'u8[1024]{0}', space=vmem, size = 0x400, scoped, tag = 'output window, operand 0, single buffered']
    #allocation3 [shape = 's32[1]{0}', space=sflag, size = 0x4, scoped, tag = 'scoped memory for attn_decoder_forward.1']
    %15 = vsyncpa [#allocation3], 0
    // Predicated region
    $region2: #{attn_decoder_forward.1} parent=1 // pred_check
      _
    $region3: #{attn_decoder_forward.1} parent=1 // pred_check_branch
      %17 = sbr.rel (0) target = $region5
    $region4: #{attn_decoder_forward.1} parent=1 // pred_region
      _
    $region5: #{attn_decoder_forward.1} parent=1 // pred_fallthru
      _
    // Predicated region
    $region6: #{attn_decoder_forward.1} parent=1 // pred_check
      _
    $region7: #{attn_decoder_forward.1} parent=1 // pred_check_branch
      %19 = sbr.rel (0) target = $region9
    $region8: #{attn_decoder_forward.1} parent=1 // pred_region
      _
    $region9: #{attn_decoder_forward.1} parent=1 // pred_fallthru
      _
    // Predicated region
    $region10: #{attn_decoder_forward.1} parent=1 // pred_check
      _
    $region11: #{attn_decoder_forward.1} parent=1 // pred_check_branch
      %21 = sbr.rel (0) target = $region13
    $region12: #{attn_decoder_forward.1} parent=1 // pred_region
      _
    $region13: #{attn_decoder_forward.1} parent=1 // pred_fallthru
      _
    // Predicated region
    $region14: #{attn_decoder_forward.1} parent=1 // pred_check
      _
    $region15: #{attn_decoder_forward.1} parent=1 // pred_check_branch
      %23 = sbr.rel (0) target = $region17
    $region16: #{attn_decoder_forward.1} parent=1 // pred_region
      _
    $region17: #{attn_decoder_forward.1} parent=1 // pred_fallthru
      _
    // Predicated region
    $region18: #{attn_decoder_forward.1} parent=1 // pred_check
      _
    $region19: #{attn_decoder_forward.1} parent=1 // pred_check_branch
      %25 = sbr.rel (0) target = $region21
    $region20: #{attn_decoder_forward.1} parent=1 // pred_region
      _
    $region21: #{attn_decoder_forward.1} parent=1 // pred_fallthru
      _
    // Predicated region
    $region22: #{attn_decoder_forward.1} parent=1 // pred_check
      _
    $region23: #{attn_decoder_forward.1} parent=1 // pred_check_branch
      %27 = sbr.rel (0) target = $region25
    $region24: #{attn_decoder_forward.1} parent=1 // pred_region
      _
    $region25: #{attn_decoder_forward.1} parent=1 // pred_fallthru
      _
    // Predicated region
    $region26: #{attn_decoder_forward.1} parent=1 // pred_check
      _
    $region27: #{attn_decoder_forward.1} parent=1 // pred_check_branch
      %29 = sbr.rel (0) target = $region29
    $region28: #{attn_decoder_forward.1} parent=1 // pred_region
      _
    $region29: #{attn_decoder_forward.1} parent=1 // pred_fallthru
      _
    // Predicated region
    $region30: #{attn_decoder_forward.1} parent=1 // pred_check
      _
    $region31: #{attn_decoder_forward.1} parent=1 // pred_check_branch
      %31 = sbr.rel (0) target = $region33
    $region32: #{attn_decoder_forward.1} parent=1 // pred_region
      _
    $region33: #{attn_decoder_forward.1} parent=1 // pred_fallthru
      _
    // Predicated region
    $region34: #{attn_decoder_forward.1} parent=1 // pred_check
      _
    $region35: #{attn_decoder_forward.1} parent=1 // pred_check_branch
      %33 = sbr.rel (0) target = $region37
    $region36: #{attn_decoder_forward.1} parent=1 // pred_region
      _
    $region37: #{attn_decoder_forward.1} parent=1 // pred_fallthru
      _
    // Predicated region
    $region38: #{attn_decoder_forward.1} parent=1 // pred_check
      _
    $region39: #{attn_decoder_forward.1} parent=1 // pred_check_branch
      %35 = sbr.rel (0) target = $region41
    $region40: #{attn_decoder_forward.1} parent=1 // pred_region
      _
    $region41: #{attn_decoder_forward.1} parent=1 // pred_fallthru
      _
    %v36 = vld [vmem:[%s0] sm:$0x3]
    %v37 = vld [vmem:[%s2] sm:$0xff]
    %v38 = vld [vmem:[%s2 + $0x8] sm:$0xff]
    %v39 = vld [vmem:[%s2 + $0x10] sm:$0xff]
    %v40 = vld [vmem:[%s2 + $0x18] sm:$0xff]
    %vm41 = vcmask 261120
    %v43 = vsel %vm41, %v36, 0
    %45 = vmatprep.subr.mxu0 0.0
    %46 = vmatpush1.msra.mxu0 %v37
    %47 = vmatprep.subr.mxu0 0.0
    %48 = vmatpush1.msra.mxu0 %v38
    %49 = vmatprep.subr.mxu0 0.0
    %50 = vmatpush1.msra.mxu0 %v39
    %51 = vmatprep.subr.mxu0 0.0
    %52 = vmatpush1.msra.mxu0 %v40
    %53 = vmatprep.subr.mxu0 0.0
    %54 = vmatpush1.msra.mxu0 0.0
    %55 = vmatprep.subr.mxu0 0.0
    %56 = vmatpush1.msra.mxu0 0.0
    %57 = vmatprep.subr.mxu0 0.0
    %58 = vmatpush1.msra.mxu0 0.0
    %59 = vmatprep.subr.mxu0 0.0
    %60 = vmatpush1.msra.mxu0 0.0
    %61 = vmatprep.subr.mxu0 0.0
    %62 = vmatpush1.msra.mxu0 0.0
    %63 = vmatprep.subr.mxu0 0.0
    %64 = vmatpush1.msra.mxu0 0.0
    %65 = vmatprep.subr.mxu0 0.0
    %66 = vmatpush1.msra.mxu0 0.0
    %67 = vmatprep.subr.mxu0 0.0
    %68 = vmatpush1.msra.mxu0 0.0
    %69 = vmatprep.subr.mxu0 0.0
    %70 = vmatpush1.msra.mxu0 0.0
    %71 = vmatprep.subr.mxu0 0.0
    %72 = vmatpush1.msra.mxu0 0.0
    %73 = vmatprep.subr.mxu0 0.0
    %74 = vmatpush1.msra.mxu0 0.0
    %75 = vmatprep.subr.mxu0 0.0
    %76 = vmatpush1.msra.mxu0 0.0
    %77 = vmatprep.subr.mxu0 0.0
    %78 = vmatpush1.msra.mxu0 0.0
    %79 = vmatprep.subr.mxu0 0.0
    %80 = vmatpush1.msra.mxu0 0.0
    %81 = vmatprep.subr.mxu0 0.0
    %82 = vmatpush1.msra.mxu0 0.0
    %83 = vmatprep.subr.mxu0 0.0
    %84 = vmatpush1.msra.mxu0 0.0
    %85 = vmatprep.subr.mxu0 0.0
    %86 = vmatpush1.msra.mxu0 0.0
    %87 = vmatprep.subr.mxu0 0.0
    %88 = vmatpush1.msra.mxu0 0.0
    %89 = vmatprep.subr.mxu0 0.0
    %90 = vmatpush1.msra.mxu0 0.0
    %91 = vmatprep.subr.mxu0 0.0
    %92 = vmatpush1.msra.mxu0 0.0
    %93 = vmatprep.subr.mxu0 0.0
    %94 = vmatpush1.msra.mxu0 0.0
    %95 = vmatprep.subr.mxu0 0.0
    %96 = vmatpush1.msra.mxu0 0.0
    %97 = vmatprep.subr.mxu0 0.0
    %98 = vmatpush1.msra.mxu0 0.0
    %99 = vmatprep.subr.mxu0 0.0
    %100 = vmatpush1.msra.mxu0 0.0
    %101 = vmatprep.subr.mxu0 0.0
    %102 = vmatpush1.msra.mxu0 0.0
    %103 = vmatprep.subr.mxu0 0.0
    %104 = vmatpush1.msra.mxu0 0.0
    %105 = vmatprep.subr.mxu0 0.0
    %106 = vmatpush1.msra.mxu0 0.0
    %107 = vmatprep.subr.mxu0 0.0
    %108 = vmatpush1.msra.mxu0 0.0
    %109 = vmatprep.mubr.f32.mxu0 0.0
    %110 = vmatmul.mubr.f32.gmra.mrb[0].mxu0 %v43
    %v111 = vpop.f32.mrb[0].mxu0
    %v112 = vadd.f32 0.0, %v111
    %v113 = vpop.f32.mrb[0].mxu0
    %114 = vdwg.mxu0
    %vm115 = vcmask 58368
    %v116 = vsel %vm115, %v112, -inf
    %117 = vmax.xlane.f32.xlu0 %v116
    %v118 = vpop.xlane.xlu0 %117
    %v119 = vsub.f32 %v112, %v118
    %v120 = vmul.f32 %v119, 1.442695
    %v121 = vpow.pop %v120
    %v122 = vsel %vm115, %v121, 0.0
    %123 = vadd.xlane.f32.xlu0 %v122
    %v124 = vpop.xlane.xlu0 %123
    %v125 = vrcp.pop %v124
    %v126 = vmul.f32 %v121, %v125
    %v127 = vld [vmem:[%s4] sm:$0x1]
    %v128 = vld [vmem:[%s6] sm:$0x1]
    %v129 = vld [vmem:[%s1] sm:$0xff]
    %v130 = vld [vmem:[%s1 + $0x8] sm:$0xff]
    %v131 = vld [vmem:[%s3] sm:$0xf]
    %vm132 = vcmask 31744
    %v134 = vsel %vm132, %v129, 0
    %v137 = vsel %vm132, %v130, 0
    %vm139 = vcmask 1043456
    %v141 = vsel %vm139, %v131, 0
    %143 = vmatprep.subr.mxu0 0.0
    %144 = vmatpush1.msra.mxu0 %v141
    %145 = vmatprep.subr.mxu0 0.0
    %146 = vmatpush1.msra.mxu0 0.0
    %147 = vmatprep.subr.mxu0 0.0
    %148 = vmatpush1.msra.mxu0 0.0
    %149 = vmatprep.subr.mxu0 0.0
    %150 = vmatpush1.msra.mxu0 0.0
    %151 = vmatprep.subr.mxu0 0.0
    %152 = vmatpush1.msra.mxu0 0.0
    %153 = vmatprep.subr.mxu0 0.0
    %154 = vmatpush1.msra.mxu0 0.0
    %155 = vmatprep.subr.mxu0 0.0
    %156 = vmatpush1.msra.mxu0 0.0
    %157 = vmatprep.subr.mxu0 0.0
    %158 = vmatpush1.msra.mxu0 0.0
    %159 = vmatprep.subr.mxu0 0.0
    %160 = vmatpush1.msra.mxu0 0.0
    %161 = vmatprep.subr.mxu0 0.0
    %162 = vmatpush1.msra.mxu0 0.0
    %163 = vmatprep.subr.mxu0 0.0
    %164 = vmatpush1.msra.mxu0 0.0
    %165 = vmatprep.subr.mxu0 0.0
    %166 = vmatpush1.msra.mxu0 0.0
    %167 = vmatprep.subr.mxu0 0.0
    %168 = vmatpush1.msra.mxu0 0.0
    %169 = vmatprep.subr.mxu0 0.0
    %170 = vmatpush1.msra.mxu0 0.0
    %171 = vmatprep.subr.mxu0 0.0
    %172 = vmatpush1.msra.mxu0 0.0
    %173 = vmatprep.subr.mxu0 0.0
    %174 = vmatpush1.msra.mxu0 0.0
    %175 = vmatprep.subr.mxu0 0.0
    %176 = vmatpush1.msra.mxu0 0.0
    %177 = vmatprep.subr.mxu0 0.0
    %178 = vmatpush1.msra.mxu0 0.0
    %179 = vmatprep.subr.mxu0 0.0
    %180 = vmatpush1.msra.mxu0 0.0
    %181 = vmatprep.subr.mxu0 0.0
    %182 = vmatpush1.msra.mxu0 0.0
    %183 = vmatprep.subr.mxu0 0.0
    %184 = vmatpush1.msra.mxu0 0.0
    %185 = vmatprep.subr.mxu0 0.0
    %186 = vmatpush1.msra.mxu0 0.0
    %187 = vmatprep.subr.mxu0 0.0
    %188 = vmatpush1.msra.mxu0 0.0
    %189 = vmatprep.subr.mxu0 0.0
    %190 = vmatpush1.msra.mxu0 0.0
    %191 = vmatprep.subr.mxu0 0.0
    %192 = vmatpush1.msra.mxu0 0.0
    %193 = vmatprep.subr.mxu0 0.0
    %194 = vmatpush1.msra.mxu0 0.0
    %195 = vmatprep.subr.mxu0 0.0
    %196 = vmatpush1.msra.mxu0 0.0
    %197 = vmatprep.subr.mxu0 0.0
    %198 = vmatpush1.msra.mxu0 0.0
    %199 = vmatprep.subr.mxu0 0.0
    %200 = vmatpush1.msra.mxu0 0.0
    %201 = vmatprep.subr.mxu0 0.0
    %202 = vmatpush1.msra.mxu0 0.0
    %203 = vmatprep.subr.mxu0 0.0
    %204 = vmatpush1.msra.mxu0 0.0
    %205 = vmatprep.subr.mxu0 0.0
    %206 = vmatpush1.msra.mxu0 0.0
    %207 = vmatprep.mubr.f32.mxu0 0.0
    %208 = vmatmul.mubr.f32.gmra.mrb[0].mxu0 %v134
    %v209 = vpop.f32.mrb[0].mxu0
    %v210 = vadd.f32 0.0, %v209
    %v211 = vpop.f32.mrb[0].mxu0
    %212 = vmatprep.mubr.f32.mxu0 0.0
    %213 = vmatmul.mubr.f32.gmra.mrb[0].mxu0 %v137
    %v214 = vpop.f32.mrb[0].mxu0
    %v215 = vadd.f32 0.0, %v214
    %v216 = vpop.f32.mrb[0].mxu0
    %217 = vdwg.mxu0
    %v218 = vlaneseq
    %v219 = vshrl.u32 %v218, 7
    %v220 = vsub.s32 0, %v219
    %v221 = vrot.slane %v126, %v220
    %223 = vbcast.lane.b32.xlu0 %v221, 256
    %v224 = vpop.permute.xlu0 %223
    %v225 = vlaneseq
    %v226 = vshrl.u32 %v225, 7
    %v227 = vsub.s32 1, %v226
    %v228 = vrot.slane %v126, %v227
    %230 = vbcast.lane.b32.xlu0 %v228, 256
    %v231 = vpop.permute.xlu0 %230
    %v232 = vmul.f32 %v224, %v210
    %v233 = vmul.f32 %v231, %v215
    %v234 = vrot.slane %v232, 4
    %v235 = vadd.f32 %v232, %v234
    %v236 = vrot.slane %v235, 2
    %v237 = vadd.f32 %v235, %v236
    %v238 = vrot.slane %v237, 1
    %v239 = vadd.f32 %v237, %v238
    %v240 = vrot.slane %v233, 4
    %v241 = vadd.f32 %v233, %v240
    %v242 = vrot.slane %v241, 2
    %v243 = vadd.f32 %v241, %v242
    %v244 = vrot.slane %v243, 1
    %v245 = vadd.f32 %v243, %v244
    %v246 = vlaneseq
    %v247 = vand.u32 %v246, 127
    %vm248 = vcmp.ge.s32.totalorder %v247, 64
    %vm249 = vcmp.lt.s32.totalorder %v247, 96
    %vm250 = vmand %vm248, %vm249
    %v251 = vld [vmem:[%s5] sm:$0xff]
    %v252 = vld [vmem:[%s5 + $0x8] sm:$0xff]
    %v253 = vld [vmem:[%s5 + $0x10] sm:$0xff]
    %v254 = vld [vmem:[%s5 + $0x18] sm:$0xff]
    %v255 = vld [vmem:[%s5 + $0x20] sm:$0xff]
    %v256 = vld [vmem:[%s5 + $0x28] sm:$0xff]
    %v257 = vld [vmem:[%s5 + $0x30] sm:$0xff]
    %v258 = vld [vmem:[%s5 + $0x38] sm:$0xff]
    %v259 = vld [vmem:[%s7] sm:$0xff]
    %v260 = vld [vmem:[%s7 + $0x8] sm:$0xff]
    %v261 = vld [vmem:[%s7 + $0x10] sm:$0xff]
    %v262 = vld [vmem:[%s7 + $0x18] sm:$0xff]
    %v264 = vlaneseq
    %v265 = vshrl.u32 %v264, 7
    %v266 = vsub.s32 0, %v265
    %v267 = vrot.slane %v127, %v266
    %v269 = vadd.f32 %v239, %v267
    %v270 = vadd.f32 %v245, %v267
    %v271 = vtanh.pop %v269
    %v272 = vtanh.pop %v270
    %v273 = vxor.u32 %v269, 2147483648
    %v274 = vxor.u32 %v270, 2147483648
    %v275 = vmul.f32 %v273, 1.442695
    %v276 = vpow.pop %v275
    %v277 = vmul.f32 %v274, 1.442695
    %v278 = vpow.pop %v277
    %v279 = vadd.f32 %v276, 1.0
    %v280 = vadd.f32 %v278, 1.0
    %v281 = vrcp.pop %v279
    %v282 = vmul.f32 1.0, %v281
    %v283 = vrcp.pop %v280
    %v284 = vmul.f32 1.0, %v283
    %v287 = vrot.slane %v272, 7
    %vm288 = vcmask 1041409
    %v289 = vsel %vm288, %v287, %v271
    %v293 = vrot.slane %v284, 7
    %v294 = vsel %vm288, %v293, %v282
    %v296 = vsel %vm250, %v289, %v294
    %v297 = vmul.f32 %v296, 0.0
    %299 = vrot.lane.b32.xlu0 %v296, 64
    %v300 = vpop.permute.xlu0 %299
    %v302 = vmul.f32 %v296, %v300
    %304 = vrot.lane.b32.xlu0 %v302, 32
    %v305 = vpop.permute.xlu0 %304
    %v307 = vadd.f32 %v297, %v305
    %v308 = vtanh.pop %v307
    %310 = vrot.lane.b32.xlu0 %v308, 64
    %v311 = vpop.permute.xlu0 %310
    %v313 = vmul.f32 %v296, %v311
    %315 = vrot.lane.b32.xlu0 %v313, 32
    %v316 = vpop.permute.xlu0 %315
    %v317 = vsel %vm41, %v316, 0
    %319 = vmatprep.subr.mxu0 %v252
    %320 = vmatpush1.msra.mxu0 %v251
    %321 = vmatprep.subr.mxu0 %v254
    %322 = vmatpush1.msra.mxu0 %v253
    %323 = vmatprep.subr.mxu0 %v256
    %324 = vmatpush1.msra.mxu0 %v255
    %325 = vmatprep.subr.mxu0 %v258
    %326 = vmatpush1.msra.mxu0 %v257
    %327 = vmatprep.subr.mxu0 0.0
    %328 = vmatpush1.msra.mxu0 0.0
    %329 = vmatprep.subr.mxu0 0.0
    %330 = vmatpush1.msra.mxu0 0.0
    %331 = vmatprep.subr.mxu0 0.0
    %332 = vmatpush1.msra.mxu0 0.0
    %333 = vmatprep.subr.mxu0 0.0
    %334 = vmatpush1.msra.mxu0 0.0
    %335 = vmatprep.subr.mxu0 0.0
    %336 = vmatpush1.msra.mxu0 0.0
    %337 = vmatprep.subr.mxu0 0.0
    %338 = vmatpush1.msra.mxu0 0.0
    %339 = vmatprep.subr.mxu0 0.0
    %340 = vmatpush1.msra.mxu0 0.0
    %341 = vmatprep.subr.mxu0 0.0
    %342 = vmatpush1.msra.mxu0 0.0
    %343 = vmatprep.subr.mxu0 0.0
    %344 = vmatpush1.msra.mxu0 0.0
    %345 = vmatprep.subr.mxu0 0.0
    %346 = vmatpush1.msra.mxu0 0.0
    %347 = vmatprep.subr.mxu0 0.0
    %348 = vmatpush1.msra.mxu0 0.0
    %349 = vmatprep.subr.mxu0 0.0
    %350 = vmatpush1.msra.mxu0 0.0
    %351 = vmatprep.subr.mxu0 0.0
    %352 = vmatpush1.msra.mxu0 0.0
    %353 = vmatprep.subr.mxu0 0.0
    %354 = vmatpush1.msra.mxu0 0.0
    %355 = vmatprep.subr.mxu0 0.0
    %356 = vmatpush1.msra.mxu0 0.0
    %357 = vmatprep.subr.mxu0 0.0
    %358 = vmatpush1.msra.mxu0 0.0
    %359 = vmatprep.subr.mxu0 0.0
    %360 = vmatpush1.msra.mxu0 0.0
    %361 = vmatprep.subr.mxu0 0.0
    %362 = vmatpush1.msra.mxu0 0.0
    %363 = vmatprep.subr.mxu0 0.0
    %364 = vmatpush1.msra.mxu0 0.0
    %365 = vmatprep.subr.mxu0 0.0
    %366 = vmatpush1.msra.mxu0 0.0
    %367 = vmatprep.subr.mxu0 0.0
    %368 = vmatpush1.msra.mxu0 0.0
    %369 = vmatprep.subr.mxu0 0.0
    %370 = vmatpush1.msra.mxu0 0.0
    %371 = vmatprep.subr.mxu0 0.0
    %372 = vmatpush1.msra.mxu0 0.0
    %373 = vmatprep.subr.mxu0 0.0
    %374 = vmatpush1.msra.mxu0 0.0
    %375 = vmatprep.subr.mxu0 0.0
    %376 = vmatpush1.msra.mxu0 0.0
    %377 = vmatprep.subr.mxu0 0.0
    %378 = vmatpush1.msra.mxu0 0.0
    %379 = vmatprep.subr.mxu0 0.0
    %380 = vmatpush1.msra.mxu0 0.0
    %381 = vmatprep.subr.mxu0 0.0
    %382 = vmatpush1.msra.mxu0 0.0
    %383 = vmatprep.mubr.f32.mxu0 0.0
    %384 = vmatmul.mubr.f32.gmra.mrb[0].mxu0 %v317
    %v385 = vpop.f32.mrb[0].mxu0
    %v386 = vadd.f32 0.0, %v385
    %v387 = vpop.f32.mrb[0].mxu0
    %v388 = vadd.f32 0.0, %v387
    %389 = vdwg.mxu0
    %v391 = vsel %vm41, 0.0, 0
    %393 = vmatprep.subr.mxu0 0.0
    %394 = vmatpush1.msra.mxu0 %v259
    %395 = vmatprep.subr.mxu0 0.0
    %396 = vmatpush1.msra.mxu0 %v260
    %397 = vmatprep.subr.mxu0 0.0
    %398 = vmatpush1.msra.mxu0 %v261
    %399 = vmatprep.subr.mxu0 0.0
    %400 = vmatpush1.msra.mxu0 %v262
    %401 = vmatprep.subr.mxu0 0.0
    %402 = vmatpush1.msra.mxu0 0.0
    %403 = vmatprep.subr.mxu0 0.0
    %404 = vmatpush1.msra.mxu0 0.0
    %405 = vmatprep.subr.mxu0 0.0
    %406 = vmatpush1.msra.mxu0 0.0
    %407 = vmatprep.subr.mxu0 0.0
    %408 = vmatpush1.msra.mxu0 0.0
    %409 = vmatprep.subr.mxu0 0.0
    %410 = vmatpush1.msra.mxu0 0.0
    %411 = vmatprep.subr.mxu0 0.0
    %412 = vmatpush1.msra.mxu0 0.0
    %413 = vmatprep.subr.mxu0 0.0
    %414 = vmatpush1.msra.mxu0 0.0
    %415 = vmatprep.subr.mxu0 0.0
    %416 = vmatpush1.msra.mxu0 0.0
    %417 = vmatprep.subr.mxu0 0.0
    %418 = vmatpush1.msra.mxu0 0.0
    %419 = vmatprep.subr.mxu0 0.0
    %420 = vmatpush1.msra.mxu0 0.0
    %421 = vmatprep.subr.mxu0 0.0
    %422 = vmatpush1.msra.mxu0 0.0
    %423 = vmatprep.subr.mxu0 0.0
    %424 = vmatpush1.msra.mxu0 0.0
    %425 = vmatprep.subr.mxu0 0.0
    %426 = vmatpush1.msra.mxu0 0.0
    %427 = vmatprep.subr.mxu0 0.0
    %428 = vmatpush1.msra.mxu0 0.0
    %429 = vmatprep.subr.mxu0 0.0
    %430 = vmatpush1.msra.mxu0 0.0
    %431 = vmatprep.subr.mxu0 0.0
    %432 = vmatpush1.msra.mxu0 0.0
    %433 = vmatprep.subr.mxu0 0.0
    %434 = vmatpush1.msra.mxu0 0.0
    %435 = vmatprep.subr.mxu0 0.0
    %436 = vmatpush1.msra.mxu0 0.0
    %437 = vmatprep.subr.mxu0 0.0
    %438 = vmatpush1.msra.mxu0 0.0
    %439 = vmatprep.subr.mxu0 0.0
    %440 = vmatpush1.msra.mxu0 0.0
    %441 = vmatprep.subr.mxu0 0.0
    %442 = vmatpush1.msra.mxu0 0.0
    %443 = vmatprep.subr.mxu0 0.0
    %444 = vmatpush1.msra.mxu0 0.0
    %445 = vmatprep.subr.mxu0 0.0
    %446 = vmatpush1.msra.mxu0 0.0
    %447 = vmatprep.subr.mxu0 0.0
    %448 = vmatpush1.msra.mxu0 0.0
    %449 = vmatprep.subr.mxu0 0.0
    %450 = vmatpush1.msra.mxu0 0.0
    %451 = vmatprep.subr.mxu0 0.0
    %452 = vmatpush1.msra.mxu0 0.0
    %453 = vmatprep.subr.mxu0 0.0
    %454 = vmatpush1.msra.mxu0 0.0
    %455 = vmatprep.subr.mxu0 0.0
    %456 = vmatpush1.msra.mxu0 0.0
    %457 = vmatprep.mubr.f32.mxu0 0.0
    %458 = vmatmul.mubr.f32.gmra.mrb[0].mxu0 %v391
    %v459 = vpop.f32.mrb[0].mxu0
    %v460 = vadd.f32 0.0, %v459
    %v461 = vpop.f32.mrb[0].mxu0
    %462 = vdwg.mxu0
    %v463 = vadd.f32 %v388, %v460
    %v465 = vlaneseq
    %v466 = vshrl.u32 %v465, 7
    %v467 = vsub.s32 0, %v466
    %v468 = vrot.slane %v128, %v467
    %v470 = vadd.f32 %v463, %v468
    %v471 = vtanh.pop %v470
    %v472 = vxor.u32 %v470, 2147483648
    %v473 = vmul.f32 %v472, 1.442695
    %v474 = vpow.pop %v473
    %v475 = vadd.f32 %v474, 1.0
    %v476 = vrcp.pop %v475
    %v477 = vmul.f32 1.0, %v476
    %v478 = vsel %vm250, %v471, %v477
    %v479 = vmul.f32 %v478, 0.0
    %481 = vrot.lane.b32.xlu0 %v478, 64
    %v482 = vpop.permute.xlu0 %481
    %v484 = vmul.f32 %v478, %v482
    %486 = vrot.lane.b32.xlu0 %v484, 32
    %v487 = vpop.permute.xlu0 %486
    %v489 = vadd.f32 %v479, %v487
    %v490 = vtanh.pop %v489
    %492 = vrot.lane.b32.xlu0 %v490, 64
    %v493 = vpop.permute.xlu0 %492
    %v495 = vmul.f32 %v478, %v493
    %v497 = vrot.slane %v386, 1
    %v500 = vadd.f32 %v210, %v386
    %v501 = vadd.f32 %v215, %v497
    %v502 = vadd.f32 %v500, %v267
    %v503 = vadd.f32 %v501, %v267
    %v504 = vtanh.pop %v502
    %v505 = vtanh.pop %v503
    %v506 = vxor.u32 %v502, 2147483648
    %v507 = vxor.u32 %v503, 2147483648
    %v508 = vmul.f32 %v506, 1.442695
    %v509 = vpow.pop %v508
    %v510 = vmul.f32 %v507, 1.442695
    %v511 = vpow.pop %v510
    %v512 = vadd.f32 %v509, 1.0
    %v513 = vadd.f32 %v511, 1.0
    %v514 = vrcp.pop %v512
    %v515 = vmul.f32 1.0, %v514
    %v516 = vrcp.pop %v513
    %v517 = vmul.f32 1.0, %v516
    %v520 = vrot.slane %v505, 7
    %v521 = vsel %vm288, %v520, %v504
    %v525 = vrot.slane %v517, 7
    %v526 = vsel %vm288, %v525, %v515
    %v528 = vsel %vm250, %v521, %v526
    %v529 = vmul.f32 %v528, %v307
    %531 = vrot.lane.b32.xlu0 %v528, 64
    %v532 = vpop.permute.xlu0 %531
    %v534 = vmul.f32 %v528, %v532
    %536 = vrot.lane.b32.xlu0 %v534, 32
    %v537 = vpop.permute.xlu0 %536
    %v539 = vadd.f32 %v529, %v537
    %v540 = vtanh.pop %v539
    %542 = vrot.lane.b32.xlu0 %v540, 64
    %v543 = vpop.permute.xlu0 %542
    %v545 = vmul.f32 %v528, %v543
    %547 = vrot.lane.b32.xlu0 %v545, 32
    %v548 = vpop.permute.xlu0 %547
    %v549 = vsel %vm41, %v548, 0
    %551 = vmatprep.subr.mxu0 %v252
    %552 = vmatpush1.msra.mxu0 %v251
    %553 = vmatprep.subr.mxu0 %v254
    %554 = vmatpush1.msra.mxu0 %v253
    %555 = vmatprep.subr.mxu0 %v256
    %556 = vmatpush1.msra.mxu0 %v255
    %557 = vmatprep.subr.mxu0 %v258
    %558 = vmatpush1.msra.mxu0 %v257
    %559 = vmatprep.subr.mxu0 0.0
    %560 = vmatpush1.msra.mxu0 0.0
    %561 = vmatprep.subr.mxu0 0.0
    %562 = vmatpush1.msra.mxu0 0.0
    %563 = vmatprep.subr.mxu0 0.0
    %564 = vmatpush1.msra.mxu0 0.0
    %565 = vmatprep.subr.mxu0 0.0
    %566 = vmatpush1.msra.mxu0 0.0
    %567 = vmatprep.subr.mxu0 0.0
    %568 = vmatpush1.msra.mxu0 0.0
    %569 = vmatprep.subr.mxu0 0.0
    %570 = vmatpush1.msra.mxu0 0.0
    %571 = vmatprep.subr.mxu0 0.0
    %572 = vmatpush1.msra.mxu0 0.0
    %573 = vmatprep.subr.mxu0 0.0
    %574 = vmatpush1.msra.mxu0 0.0
    %575 = vmatprep.subr.mxu0 0.0
    %576 = vmatpush1.msra.mxu0 0.0
    %577 = vmatprep.subr.mxu0 0.0
    %578 = vmatpush1.msra.mxu0 0.0
    %579 = vmatprep.subr.mxu0 0.0
    %580 = vmatpush1.msra.mxu0 0.0
    %581 = vmatprep.subr.mxu0 0.0
    %582 = vmatpush1.msra.mxu0 0.0
    %583 = vmatprep.subr.mxu0 0.0
    %584 = vmatpush1.msra.mxu0 0.0
    %585 = vmatprep.subr.mxu0 0.0
    %586 = vmatpush1.msra.mxu0 0.0
    %587 = vmatprep.subr.mxu0 0.0
    %588 = vmatpush1.msra.mxu0 0.0
    %589 = vmatprep.subr.mxu0 0.0
    %590 = vmatpush1.msra.mxu0 0.0
    %591 = vmatprep.subr.mxu0 0.0
    %592 = vmatpush1.msra.mxu0 0.0
    %593 = vmatprep.subr.mxu0 0.0
    %594 = vmatpush1.msra.mxu0 0.0
    %595 = vmatprep.subr.mxu0 0.0
    %596 = vmatpush1.msra.mxu0 0.0
    %597 = vmatprep.subr.mxu0 0.0
    %598 = vmatpush1.msra.mxu0 0.0
    %599 = vmatprep.subr.mxu0 0.0
    %600 = vmatpush1.msra.mxu0 0.0
    %601 = vmatprep.subr.mxu0 0.0
    %602 = vmatpush1.msra.mxu0 0.0
    %603 = vmatprep.subr.mxu0 0.0
    %604 = vmatpush1.msra.mxu0 0.0
    %605 = vmatprep.subr.mxu0 0.0
    %606 = vmatpush1.msra.mxu0 0.0
    %607 = vmatprep.subr.mxu0 0.0
    %608 = vmatpush1.msra.mxu0 0.0
    %609 = vmatprep.subr.mxu0 0.0
    %610 = vmatpush1.msra.mxu0 0.0
    %611 = vmatprep.subr.mxu0 0.0
    %612 = vmatpush1.msra.mxu0 0.0
    %613 = vmatprep.subr.mxu0 0.0
    %614 = vmatpush1.msra.mxu0 0.0
    %615 = vmatprep.mubr.f32.mxu0 0.0
    %616 = vmatmul.mubr.f32.gmra.mrb[0].mxu0 %v549
    %v617 = vpop.f32.mrb[0].mxu0
    %v618 = vadd.f32 0.0, %v617
    %v619 = vpop.f32.mrb[0].mxu0
    %v620 = vadd.f32 0.0, %v619
    %621 = vdwg.mxu0
    %623 = vrot.lane.b32.xlu0 %v495, 32
    %v624 = vpop.permute.xlu0 %623
    %v625 = vsel %vm41, %v624, 0
    %627 = vmatprep.subr.mxu0 0.0
    %628 = vmatpush1.msra.mxu0 %v259
    %629 = vmatprep.subr.mxu0 0.0
    %630 = vmatpush1.msra.mxu0 %v260
    %631 = vmatprep.subr.mxu0 0.0
    %632 = vmatpush1.msra.mxu0 %v261
    %633 = vmatprep.subr.mxu0 0.0
    %634 = vmatpush1.msra.mxu0 %v262
    %635 = vmatprep.subr.mxu0 0.0
    %636 = vmatpush1.msra.mxu0 0.0
    %637 = vmatprep.subr.mxu0 0.0
    %638 = vmatpush1.msra.mxu0 0.0
    %639 = vmatprep.subr.mxu0 0.0
    %640 = vmatpush1.msra.mxu0 0.0
    %641 = vmatprep.subr.mxu0 0.0
    %642 = vmatpush1.msra.mxu0 0.0
    %643 = vmatprep.subr.mxu0 0.0
    %644 = vmatpush1.msra.mxu0 0.0
    %645 = vmatprep.subr.mxu0 0.0
    %646 = vmatpush1.msra.mxu0 0.0
    %647 = vmatprep.subr.mxu0 0.0
    %648 = vmatpush1.msra.mxu0 0.0
    %649 = vmatprep.subr.mxu0 0.0
    %650 = vmatpush1.msra.mxu0 0.0
    %651 = vmatprep.subr.mxu0 0.0
    %652 = vmatpush1.msra.mxu0 0.0
    %653 = vmatprep.subr.mxu0 0.0
    %654 = vmatpush1.msra.mxu0 0.0
    %655 = vmatprep.subr.mxu0 0.0
    %656 = vmatpush1.msra.mxu0 0.0
    %657 = vmatprep.subr.mxu0 0.0
    %658 = vmatpush1.msra.mxu0 0.0
    %659 = vmatprep.subr.mxu0 0.0
    %660 = vmatpush1.msra.mxu0 0.0
    %661 = vmatprep.subr.mxu0 0.0
    %662 = vmatpush1.msra.mxu0 0.0
    %663 = vmatprep.subr.mxu0 0.0
    %664 = vmatpush1.msra.mxu0 0.0
    %665 = vmatprep.subr.mxu0 0.0
    %666 = vmatpush1.msra.mxu0 0.0
    %667 = vmatprep.subr.mxu0 0.0
    %668 = vmatpush1.msra.mxu0 0.0
    %669 = vmatprep.subr.mxu0 0.0
    %670 = vmatpush1.msra.mxu0 0.0
    %671 = vmatprep.subr.mxu0 0.0
    %672 = vmatpush1.msra.mxu0 0.0
    %673 = vmatprep.subr.mxu0 0.0
    %674 = vmatpush1.msra.mxu0 0.0
    %675 = vmatprep.subr.mxu0 0.0
    %676 = vmatpush1.msra.mxu0 0.0
    %677 = vmatprep.subr.mxu0 0.0
    %678 = vmatpush1.msra.mxu0 0.0
    %679 = vmatprep.subr.mxu0 0.0
    %680 = vmatpush1.msra.mxu0 0.0
    %681 = vmatprep.subr.mxu0 0.0
    %682 = vmatpush1.msra.mxu0 0.0
    %683 = vmatprep.subr.mxu0 0.0
    %684 = vmatpush1.msra.mxu0 0.0
    %685 = vmatprep.subr.mxu0 0.0
    %686 = vmatpush1.msra.mxu0 0.0
    %687 = vmatprep.subr.mxu0 0.0
    %688 = vmatpush1.msra.mxu0 0.0
    %689 = vmatprep.subr.mxu0 0.0
    %690 = vmatpush1.msra.mxu0 0.0
    %691 = vmatprep.mubr.f32.mxu0 0.0
    %692 = vmatmul.mubr.f32.gmra.mrb[0].mxu0 %v625
    %v693 = vpop.f32.mrb[0].mxu0
    %v694 = vadd.f32 0.0, %v693
    %v695 = vpop.f32.mrb[0].mxu0
    %696 = vdwg.mxu0
    %v697 = vadd.f32 %v620, %v694
    %v698 = vadd.f32 %v697, %v468
    %v699 = vtanh.pop %v698
    %v700 = vxor.u32 %v698, 2147483648
    %v701 = vmul.f32 %v700, 1.442695
    %v702 = vpow.pop %v701
    %v703 = vadd.f32 %v702, 1.0
    %v704 = vrcp.pop %v703
    %v705 = vmul.f32 1.0, %v704
    %v706 = vsel %vm250, %v699, %v705
    %v707 = vmul.f32 %v706, %v489
    %709 = vrot.lane.b32.xlu0 %v706, 64
    %v710 = vpop.permute.xlu0 %709
    %v712 = vmul.f32 %v706, %v710
    %714 = vrot.lane.b32.xlu0 %v712, 32
    %v715 = vpop.permute.xlu0 %714
    %v717 = vadd.f32 %v707, %v715
    %v718 = vtanh.pop %v717
    %720 = vrot.lane.b32.xlu0 %v718, 64
    %v721 = vpop.permute.xlu0 %720
    %v723 = vmul.f32 %v706, %v721
    %v725 = vrot.slane %v618, 7
    %v728 = vadd.f32 %v210, %v725
    %v729 = vadd.f32 %v215, %v618
    %v730 = vadd.f32 %v728, %v267
    %v731 = vadd.f32 %v729, %v267
    %v732 = vtanh.pop %v730
    %v733 = vtanh.pop %v731
    %v734 = vxor.u32 %v730, 2147483648
    %v735 = vxor.u32 %v731, 2147483648
    %v736 = vmul.f32 %v734, 1.442695
    %v737 = vpow.pop %v736
    %v738 = vmul.f32 %v735, 1.442695
    %v739 = vpow.pop %v738
    %v740 = vadd.f32 %v737, 1.0
    %v741 = vadd.f32 %v739, 1.0
    %v742 = vrcp.pop %v740
    %v743 = vmul.f32 1.0, %v742
    %v744 = vrcp.pop %v741
    %v745 = vmul.f32 1.0, %v744
    %v748 = vrot.slane %v732, 1
    %v749 = vsel %vm288, %v733, %v748
    %v753 = vrot.slane %v743, 1
    %v754 = vsel %vm288, %v745, %v753
    %v756 = vsel %vm250, %v749, %v754
    %v757 = vmul.f32 %v756, %v539
    %759 = vrot.lane.b32.xlu0 %v756, 64
    %v760 = vpop.permute.xlu0 %759
    %v762 = vmul.f32 %v756, %v760
    %764 = vrot.lane.b32.xlu0 %v762, 32
    %v765 = vpop.permute.xlu0 %764
    %v767 = vadd.f32 %v757, %v765
    %v768 = vtanh.pop %v767
    %770 = vrot.lane.b32.xlu0 %v768, 64
    %v771 = vpop.permute.xlu0 %770
    %v773 = vmul.f32 %v756, %v771
    %775 = vrot.lane.b32.xlu0 %v773, 32
    %v776 = vpop.permute.xlu0 %775
    %v777 = vsel %vm41, %v776, 0
    %779 = vmatprep.subr.mxu0 %v252
    %780 = vmatpush1.msra.mxu0 %v251
    %781 = vmatprep.subr.mxu0 %v254
    %782 = vmatpush1.msra.mxu0 %v253
    %783 = vmatprep.subr.mxu0 %v256
    %784 = vmatpush1.msra.mxu0 %v255
    %785 = vmatprep.subr.mxu0 %v258
    %786 = vmatpush1.msra.mxu0 %v257
    %787 = vmatprep.subr.mxu0 0.0
    %788 = vmatpush1.msra.mxu0 0.0
    %789 = vmatprep.subr.mxu0 0.0
    %790 = vmatpush1.msra.mxu0 0.0
    %791 = vmatprep.subr.mxu0 0.0
    %792 = vmatpush1.msra.mxu0 0.0
    %793 = vmatprep.subr.mxu0 0.0
    %794 = vmatpush1.msra.mxu0 0.0
    %795 = vmatprep.subr.mxu0 0.0
    %796 = vmatpush1.msra.mxu0 0.0
    %797 = vmatprep.subr.mxu0 0.0
    %798 = vmatpush1.msra.mxu0 0.0
    %799 = vmatprep.subr.mxu0 0.0
    %800 = vmatpush1.msra.mxu0 0.0
    %801 = vmatprep.subr.mxu0 0.0
    %802 = vmatpush1.msra.mxu0 0.0
    %803 = vmatprep.subr.mxu0 0.0
    %804 = vmatpush1.msra.mxu0 0.0
    %805 = vmatprep.subr.mxu0 0.0
    %806 = vmatpush1.msra.mxu0 0.0
    %807 = vmatprep.subr.mxu0 0.0
    %808 = vmatpush1.msra.mxu0 0.0
    %809 = vmatprep.subr.mxu0 0.0
    %810 = vmatpush1.msra.mxu0 0.0
    %811 = vmatprep.subr.mxu0 0.0
    %812 = vmatpush1.msra.mxu0 0.0
    %813 = vmatprep.subr.mxu0 0.0
    %814 = vmatpush1.msra.mxu0 0.0
    %815 = vmatprep.subr.mxu0 0.0
    %816 = vmatpush1.msra.mxu0 0.0
    %817 = vmatprep.subr.mxu0 0.0
    %818 = vmatpush1.msra.mxu0 0.0
    %819 = vmatprep.subr.mxu0 0.0
    %820 = vmatpush1.msra.mxu0 0.0
    %821 = vmatprep.subr.mxu0 0.0
    %822 = vmatpush1.msra.mxu0 0.0
    %823 = vmatprep.subr.mxu0 0.0
    %824 = vmatpush1.msra.mxu0 0.0
    %825 = vmatprep.subr.mxu0 0.0
    %826 = vmatpush1.msra.mxu0 0.0
    %827 = vmatprep.subr.mxu0 0.0
    %828 = vmatpush1.msra.mxu0 0.0
    %829 = vmatprep.subr.mxu0 0.0
    %830 = vmatpush1.msra.mxu0 0.0
    %831 = vmatprep.subr.mxu0 0.0
    %832 = vmatpush1.msra.mxu0 0.0
    %833 = vmatprep.subr.mxu0 0.0
    %834 = vmatpush1.msra.mxu0 0.0
    %835 = vmatprep.subr.mxu0 0.0
    %836 = vmatpush1.msra.mxu0 0.0
    %837 = vmatprep.subr.mxu0 0.0
    %838 = vmatpush1.msra.mxu0 0.0
    %839 = vmatprep.subr.mxu0 0.0
    %840 = vmatpush1.msra.mxu0 0.0
    %841 = vmatprep.subr.mxu0 0.0
    %842 = vmatpush1.msra.mxu0 0.0
    %843 = vmatprep.mubr.f32.mxu0 0.0
    %844 = vmatmul.mubr.f32.gmra.mrb[0].mxu0 %v777
    %v845 = vpop.f32.mrb[0].mxu0
    %v846 = vadd.f32 0.0, %v845
    %v847 = vpop.f32.mrb[0].mxu0
    %v848 = vadd.f32 0.0, %v847
    %849 = vdwg.mxu0
    %851 = vrot.lane.b32.xlu0 %v723, 32
    %v852 = vpop.permute.xlu0 %851
    %v853 = vsel %vm41, %v852, 0
    %855 = vmatprep.subr.mxu0 0.0
    %856 = vmatpush1.msra.mxu0 %v259
    %857 = vmatprep.subr.mxu0 0.0
    %858 = vmatpush1.msra.mxu0 %v260
    %859 = vmatprep.subr.mxu0 0.0
    %860 = vmatpush1.msra.mxu0 %v261
    %861 = vmatprep.subr.mxu0 0.0
    %862 = vmatpush1.msra.mxu0 %v262
    %863 = vmatprep.subr.mxu0 0.0
    %864 = vmatpush1.msra.mxu0 0.0
    %865 = vmatprep.subr.mxu0 0.0
    %866 = vmatpush1.msra.mxu0 0.0
    %867 = vmatprep.subr.mxu0 0.0
    %868 = vmatpush1.msra.mxu0 0.0
    %869 = vmatprep.subr.mxu0 0.0
    %870 = vmatpush1.msra.mxu0 0.0
    %871 = vmatprep.subr.mxu0 0.0
    %872 = vmatpush1.msra.mxu0 0.0
    %873 = vmatprep.subr.mxu0 0.0
    %874 = vmatpush1.msra.mxu0 0.0
    %875 = vmatprep.subr.mxu0 0.0
    %876 = vmatpush1.msra.mxu0 0.0
    %877 = vmatprep.subr.mxu0 0.0
    %878 = vmatpush1.msra.mxu0 0.0
    %879 = vmatprep.subr.mxu0 0.0
    %880 = vmatpush1.msra.mxu0 0.0
    %881 = vmatprep.subr.mxu0 0.0
    %882 = vmatpush1.msra.mxu0 0.0
    %883 = vmatprep.subr.mxu0 0.0
    %884 = vmatpush1.msra.mxu0 0.0
    %885 = vmatprep.subr.mxu0 0.0
    %886 = vmatpush1.msra.mxu0 0.0
    %887 = vmatprep.subr.mxu0 0.0
    %888 = vmatpush1.msra.mxu0 0.0
    %889 = vmatprep.subr.mxu0 0.0
    %890 = vmatpush1.msra.mxu0 0.0
    %891 = vmatprep.subr.mxu0 0.0
    %892 = vmatpush1.msra.mxu0 0.0
    %893 = vmatprep.subr.mxu0 0.0
    %894 = vmatpush1.msra.mxu0 0.0
    %895 = vmatprep.subr.mxu0 0.0
    %896 = vmatpush1.msra.mxu0 0.0
    %897 = vmatprep.subr.mxu0 0.0
    %898 = vmatpush1.msra.mxu0 0.0
    %899 = vmatprep.subr.mxu0 0.0
    %900 = vmatpush1.msra.mxu0 0.0
    %901 = vmatprep.subr.mxu0 0.0
    %902 = vmatpush1.msra.mxu0 0.0
    %903 = vmatprep.subr.mxu0 0.0
    %904 = vmatpush1.msra.mxu0 0.0
    %905 = vmatprep.subr.mxu0 0.0
    %906 = vmatpush1.msra.mxu0 0.0
    %907 = vmatprep.subr.mxu0 0.0
    %908 = vmatpush1.msra.mxu0 0.0
    %909 = vmatprep.subr.mxu0 0.0
    %910 = vmatpush1.msra.mxu0 0.0
    %911 = vmatprep.subr.mxu0 0.0
    %912 = vmatpush1.msra.mxu0 0.0
    %913 = vmatprep.subr.mxu0 0.0
    %914 = vmatpush1.msra.mxu0 0.0
    %915 = vmatprep.subr.mxu0 0.0
    %916 = vmatpush1.msra.mxu0 0.0
    %917 = vmatprep.subr.mxu0 0.0
    %918 = vmatpush1.msra.mxu0 0.0
    %919 = vmatprep.mubr.f32.mxu0 0.0
    %920 = vmatmul.mubr.f32.gmra.mrb[0].mxu0 %v853
    %v921 = vpop.f32.mrb[0].mxu0
    %v922 = vadd.f32 0.0, %v921
    %v923 = vpop.f32.mrb[0].mxu0
    %924 = vdwg.mxu0
    %v925 = vadd.f32 %v848, %v922
    %v926 = vadd.f32 %v925, %v468
    %v927 = vtanh.pop %v926
    %v928 = vxor.u32 %v926, 2147483648
    %v929 = vmul.f32 %v928, 1.442695
    %v930 = vpow.pop %v929
    %v931 = vadd.f32 %v930, 1.0
    %v932 = vrcp.pop %v931
    %v933 = vmul.f32 1.0, %v932
    %v934 = vsel %vm250, %v927, %v933
    %v935 = vmul.f32 %v934, %v717
    %937 = vrot.lane.b32.xlu0 %v934, 64
    %v938 = vpop.permute.xlu0 %937
    %v940 = vmul.f32 %v934, %v938
    %942 = vrot.lane.b32.xlu0 %v940, 32
    %v943 = vpop.permute.xlu0 %942
    %v945 = vadd.f32 %v935, %v943
    %v946 = vtanh.pop %v945
    %948 = vrot.lane.b32.xlu0 %v946, 64
    %v949 = vpop.permute.xlu0 %948
    %v951 = vmul.f32 %v934, %v949
    %v953 = vrot.slane %v846, 6
    %v954 = vrot.slane %v846, 7
    %v957 = vadd.f32 %v210, %v953
    %v958 = vadd.f32 %v215, %v954
    %v959 = vadd.f32 %v957, %v267
    %v960 = vadd.f32 %v958, %v267
    %v961 = vtanh.pop %v959
    %v962 = vtanh.pop %v960
    %v963 = vxor.u32 %v959, 2147483648
    %v964 = vxor.u32 %v960, 2147483648
    %v965 = vmul.f32 %v963, 1.442695
    %v966 = vpow.pop %v965
    %v967 = vmul.f32 %v964, 1.442695
    %v968 = vpow.pop %v967
    %v969 = vadd.f32 %v966, 1.0
    %v970 = vadd.f32 %v968, 1.0
    %v971 = vrcp.pop %v969
    %v972 = vmul.f32 1.0, %v971
    %v973 = vrcp.pop %v970
    %v974 = vmul.f32 1.0, %v973
    %v977 = vrot.slane %v961, 2
    %v978 = vrot.slane %v962, 1
    %v979 = vsel %vm288, %v978, %v977
    %v983 = vrot.slane %v972, 2
    %v984 = vrot.slane %v974, 1
    %v985 = vsel %vm288, %v984, %v983
    %v987 = vsel %vm250, %v979, %v985
    %v988 = vmul.f32 %v987, %v767
    %990 = vrot.lane.b32.xlu0 %v987, 64
    %v991 = vpop.permute.xlu0 %990
    %v993 = vmul.f32 %v987, %v991
    %995 = vrot.lane.b32.xlu0 %v993, 32
    %v996 = vpop.permute.xlu0 %995
    %v998 = vadd.f32 %v988, %v996
    %v999 = vtanh.pop %v998
    %1001 = vrot.lane.b32.xlu0 %v999, 64
    %v1002 = vpop.permute.xlu0 %1001
    %v1004 = vmul.f32 %v987, %v1002
    %1006 = vrot.lane.b32.xlu0 %v1004, 32
    %v1007 = vpop.permute.xlu0 %1006
    %v1008 = vsel %vm41, %v1007, 0
    %1010 = vmatprep.subr.mxu0 %v252
    %1011 = vmatpush1.msra.mxu0 %v251
    %1012 = vmatprep.subr.mxu0 %v254
    %1013 = vmatpush1.msra.mxu0 %v253
    %1014 = vmatprep.subr.mxu0 %v256
    %1015 = vmatpush1.msra.mxu0 %v255
    %1016 = vmatprep.subr.mxu0 %v258
    %1017 = vmatpush1.msra.mxu0 %v257
    %1018 = vmatprep.subr.mxu0 0.0
    %1019 = vmatpush1.msra.mxu0 0.0
    %1020 = vmatprep.subr.mxu0 0.0
    %1021 = vmatpush1.msra.mxu0 0.0
    %1022 = vmatprep.subr.mxu0 0.0
    %1023 = vmatpush1.msra.mxu0 0.0
    %1024 = vmatprep.subr.mxu0 0.0
    %1025 = vmatpush1.msra.mxu0 0.0
    %1026 = vmatprep.subr.mxu0 0.0
    %1027 = vmatpush1.msra.mxu0 0.0
    %1028 = vmatprep.subr.mxu0 0.0
    %1029 = vmatpush1.msra.mxu0 0.0
    %1030 = vmatprep.subr.mxu0 0.0
    %1031 = vmatpush1.msra.mxu0 0.0
    %1032 = vmatprep.subr.mxu0 0.0
    %1033 = vmatpush1.msra.mxu0 0.0
    %1034 = vmatprep.subr.mxu0 0.0
    %1035 = vmatpush1.msra.mxu0 0.0
    %1036 = vmatprep.subr.mxu0 0.0
    %1037 = vmatpush1.msra.mxu0 0.0
    %1038 = vmatprep.subr.mxu0 0.0
    %1039 = vmatpush1.msra.mxu0 0.0
    %1040 = vmatprep.subr.mxu0 0.0
    %1041 = vmatpush1.msra.mxu0 0.0
    %1042 = vmatprep.subr.mxu0 0.0
    %1043 = vmatpush1.msra.mxu0 0.0
    %1044 = vmatprep.subr.mxu0 0.0
    %1045 = vmatpush1.msra.mxu0 0.0
    %1046 = vmatprep.subr.mxu0 0.0
    %1047 = vmatpush1.msra.mxu0 0.0
    %1048 = vmatprep.subr.mxu0 0.0
    %1049 = vmatpush1.msra.mxu0 0.0
    %1050 = vmatprep.subr.mxu0 0.0
    %1051 = vmatpush1.msra.mxu0 0.0
    %1052 = vmatprep.subr.mxu0 0.0
    %1053 = vmatpush1.msra.mxu0 0.0
    %1054 = vmatprep.subr.mxu0 0.0
    %1055 = vmatpush1.msra.mxu0 0.0
    %1056 = vmatprep.subr.mxu0 0.0
    %1057 = vmatpush1.msra.mxu0 0.0
    %1058 = vmatprep.subr.mxu0 0.0
    %1059 = vmatpush1.msra.mxu0 0.0
    %1060 = vmatprep.subr.mxu0 0.0
    %1061 = vmatpush1.msra.mxu0 0.0
    %1062 = vmatprep.subr.mxu0 0.0
    %1063 = vmatpush1.msra.mxu0 0.0
    %1064 = vmatprep.subr.mxu0 0.0
    %1065 = vmatpush1.msra.mxu0 0.0
    %1066 = vmatprep.subr.mxu0 0.0
    %1067 = vmatpush1.msra.mxu0 0.0
    %1068 = vmatprep.subr.mxu0 0.0
    %1069 = vmatpush1.msra.mxu0 0.0
    %1070 = vmatprep.subr.mxu0 0.0
    %1071 = vmatpush1.msra.mxu0 0.0
    %1072 = vmatprep.subr.mxu0 0.0
    %1073 = vmatpush1.msra.mxu0 0.0
    %1074 = vmatprep.mubr.f32.mxu0 0.0
    %1075 = vmatmul.mubr.f32.gmra.mrb[0].mxu0 %v1008
    %v1076 = vpop.f32.mrb[0].mxu0
    %v1077 = vadd.f32 0.0, %v1076
    %v1078 = vpop.f32.mrb[0].mxu0
    %v1079 = vadd.f32 0.0, %v1078
    %1080 = vdwg.mxu0
    %1082 = vrot.lane.b32.xlu0 %v951, 32
    %v1083 = vpop.permute.xlu0 %1082
    %v1084 = vsel %vm41, %v1083, 0
    %1086 = vmatprep.subr.mxu0 0.0
    %1087 = vmatpush1.msra.mxu0 %v259
    %1088 = vmatprep.subr.mxu0 0.0
    %1089 = vmatpush1.msra.mxu0 %v260
    %1090 = vmatprep.subr.mxu0 0.0
    %1091 = vmatpush1.msra.mxu0 %v261
    %1092 = vmatprep.subr.mxu0 0.0
    %1093 = vmatpush1.msra.mxu0 %v262
    %1094 = vmatprep.subr.mxu0 0.0
    %1095 = vmatpush1.msra.mxu0 0.0
    %1096 = vmatprep.subr.mxu0 0.0
    %1097 = vmatpush1.msra.mxu0 0.0
    %1098 = vmatprep.subr.mxu0 0.0
    %1099 = vmatpush1.msra.mxu0 0.0
    %1100 = vmatprep.subr.mxu0 0.0
    %1101 = vmatpush1.msra.mxu0 0.0
    %1102 = vmatprep.subr.mxu0 0.0
    %1103 = vmatpush1.msra.mxu0 0.0
    %1104 = vmatprep.subr.mxu0 0.0
    %1105 = vmatpush1.msra.mxu0 0.0
    %1106 = vmatprep.subr.mxu0 0.0
    %1107 = vmatpush1.msra.mxu0 0.0
    %1108 = vmatprep.subr.mxu0 0.0
    %1109 = vmatpush1.msra.mxu0 0.0
    %1110 = vmatprep.subr.mxu0 0.0
    %1111 = vmatpush1.msra.mxu0 0.0
    %1112 = vmatprep.subr.mxu0 0.0
    %1113 = vmatpush1.msra.mxu0 0.0
    %1114 = vmatprep.subr.mxu0 0.0
    %1115 = vmatpush1.msra.mxu0 0.0
    %1116 = vmatprep.subr.mxu0 0.0
    %1117 = vmatpush1.msra.mxu0 0.0
    %1118 = vmatprep.subr.mxu0 0.0
    %1119 = vmatpush1.msra.mxu0 0.0
    %1120 = vmatprep.subr.mxu0 0.0
    %1121 = vmatpush1.msra.mxu0 0.0
    %1122 = vmatprep.subr.mxu0 0.0
    %1123 = vmatpush1.msra.mxu0 0.0
    %1124 = vmatprep.subr.mxu0 0.0
    %1125 = vmatpush1.msra.mxu0 0.0
    %1126 = vmatprep.subr.mxu0 0.0
    %1127 = vmatpush1.msra.mxu0 0.0
    %1128 = vmatprep.subr.mxu0 0.0
    %1129 = vmatpush1.msra.mxu0 0.0
    %1130 = vmatprep.subr.mxu0 0.0
    %1131 = vmatpush1.msra.mxu0 0.0
    %1132 = vmatprep.subr.mxu0 0.0
    %1133 = vmatpush1.msra.mxu0 0.0
    %1134 = vmatprep.subr.mxu0 0.0
    %1135 = vmatpush1.msra.mxu0 0.0
    %1136 = vmatprep.subr.mxu0 0.0
    %1137 = vmatpush1.msra.mxu0 0.0
    %1138 = vmatprep.subr.mxu0 0.0
    %1139 = vmatpush1.msra.mxu0 0.0
    %1140 = vmatprep.subr.mxu0 0.0
    %1141 = vmatpush1.msra.mxu0 0.0
    %1142 = vmatprep.subr.mxu0 0.0
    %1143 = vmatpush1.msra.mxu0 0.0
    %1144 = vmatprep.subr.mxu0 0.0
    %1145 = vmatpush1.msra.mxu0 0.0
    %1146 = vmatprep.subr.mxu0 0.0
    %1147 = vmatpush1.msra.mxu0 0.0
    %1148 = vmatprep.subr.mxu0 0.0
    %1149 = vmatpush1.msra.mxu0 0.0
    %1150 = vmatprep.mubr.f32.mxu0 0.0
    %1151 = vmatmul.mubr.f32.gmra.mrb[0].mxu0 %v1084
    %v1152 = vpop.f32.mrb[0].mxu0
    %v1153 = vadd.f32 0.0, %v1152
    %v1154 = vpop.f32.mrb[0].mxu0
    %1155 = vdwg.mxu0
    %v1156 = vadd.f32 %v1079, %v1153
    %v1157 = vadd.f32 %v1156, %v468
    %v1158 = vtanh.pop %v1157
    %v1159 = vxor.u32 %v1157, 2147483648
    %v1160 = vmul.f32 %v1159, 1.442695
    %v1161 = vpow.pop %v1160
    %v1162 = vadd.f32 %v1161, 1.0
    %v1163 = vrcp.pop %v1162
    %v1164 = vmul.f32 1.0, %v1163
    %v1165 = vsel %vm250, %v1158, %v1164
    %v1166 = vmul.f32 %v1165, %v945
    %1168 = vrot.lane.b32.xlu0 %v1165, 64
    %v1169 = vpop.permute.xlu0 %1168
    %v1171 = vmul.f32 %v1165, %v1169
    %1173 = vrot.lane.b32.xlu0 %v1171, 32
    %v1174 = vpop.permute.xlu0 %1173
    %v1176 = vadd.f32 %v1166, %v1174
    %v1177 = vtanh.pop %v1176
    %1179 = vrot.lane.b32.xlu0 %v1177, 64
    %v1180 = vpop.permute.xlu0 %1179
    %v1182 = vmul.f32 %v1165, %v1180
    %v1184 = vrot.slane %v1077, 5
    %v1185 = vrot.slane %v1077, 6
    %v1188 = vadd.f32 %v210, %v1184
    %v1189 = vadd.f32 %v215, %v1185
    %v1190 = vadd.f32 %v1188, %v267
    %v1191 = vadd.f32 %v1189, %v267
    %v1192 = vtanh.pop %v1190
    %v1193 = vtanh.pop %v1191
    %v1194 = vxor.u32 %v1190, 2147483648
    %v1195 = vxor.u32 %v1191, 2147483648
    %v1196 = vmul.f32 %v1194, 1.442695
    %v1197 = vpow.pop %v1196
    %v1198 = vmul.f32 %v1195, 1.442695
    %v1199 = vpow.pop %v1198
    %v1200 = vadd.f32 %v1197, 1.0
    %v1201 = vadd.f32 %v1199, 1.0
    %v1202 = vrcp.pop %v1200
    %v1203 = vmul.f32 1.0, %v1202
    %v1204 = vrcp.pop %v1201
    %v1205 = vmul.f32 1.0, %v1204
    %v1208 = vrot.slane %v1192, 3
    %v1209 = vrot.slane %v1193, 2
    %v1210 = vsel %vm288, %v1209, %v1208
    %v1214 = vrot.slane %v1203, 3
    %v1215 = vrot.slane %v1205, 2
    %v1216 = vsel %vm288, %v1215, %v1214
    %v1218 = vsel %vm250, %v1210, %v1216
    %v1219 = vmul.f32 %v1218, %v998
    %1221 = vrot.lane.b32.xlu0 %v1218, 64
    %v1222 = vpop.permute.xlu0 %1221
    %v1224 = vmul.f32 %v1218, %v1222
    %1226 = vrot.lane.b32.xlu0 %v1224, 32
    %v1227 = vpop.permute.xlu0 %1226
    %v1229 = vadd.f32 %v1219, %v1227
    %v1230 = vtanh.pop %v1229
    %1232 = vrot.lane.b32.xlu0 %v1230, 64
    %v1233 = vpop.permute.xlu0 %1232
    %v1235 = vmul.f32 %v1218, %v1233
    %1237 = vrot.lane.b32.xlu0 %v1235, 32
    %v1238 = vpop.permute.xlu0 %1237
    %v1239 = vsel %vm41, %v1238, 0
    %1241 = vmatprep.subr.mxu0 %v252
    %1242 = vmatpush1.msra.mxu0 %v251
    %1243 = vmatprep.subr.mxu0 %v254
    %1244 = vmatpush1.msra.mxu0 %v253
    %1245 = vmatprep.subr.mxu0 %v256
    %1246 = vmatpush1.msra.mxu0 %v255
    %1247 = vmatprep.subr.mxu0 %v258
    %1248 = vmatpush1.msra.mxu0 %v257
    %1249 = vmatprep.subr.mxu0 0.0
    %1250 = vmatpush1.msra.mxu0 0.0
    %1251 = vmatprep.subr.mxu0 0.0
    %1252 = vmatpush1.msra.mxu0 0.0
    %1253 = vmatprep.subr.mxu0 0.0
    %1254 = vmatpush1.msra.mxu0 0.0
    %1255 = vmatprep.subr.mxu0 0.0
    %1256 = vmatpush1.msra.mxu0 0.0
    %1257 = vmatprep.subr.mxu0 0.0
    %1258 = vmatpush1.msra.mxu0 0.0
    %1259 = vmatprep.subr.mxu0 0.0
    %1260 = vmatpush1.msra.mxu0 0.0
    %1261 = vmatprep.subr.mxu0 0.0
    %1262 = vmatpush1.msra.mxu0 0.0
    %1263 = vmatprep.subr.mxu0 0.0
    %1264 = vmatpush1.msra.mxu0 0.0
    %1265 = vmatprep.subr.mxu0 0.0
    %1266 = vmatpush1.msra.mxu0 0.0
    %1267 = vmatprep.subr.mxu0 0.0
    %1268 = vmatpush1.msra.mxu0 0.0
    %1269 = vmatprep.subr.mxu0 0.0
    %1270 = vmatpush1.msra.mxu0 0.0
    %1271 = vmatprep.subr.mxu0 0.0
    %1272 = vmatpush1.msra.mxu0 0.0
    %1273 = vmatprep.subr.mxu0 0.0
    %1274 = vmatpush1.msra.mxu0 0.0
    %1275 = vmatprep.subr.mxu0 0.0
    %1276 = vmatpush1.msra.mxu0 0.0
    %1277 = vmatprep.subr.mxu0 0.0
    %1278 = vmatpush1.msra.mxu0 0.0
    %1279 = vmatprep.subr.mxu0 0.0
    %1280 = vmatpush1.msra.mxu0 0.0
    %1281 = vmatprep.subr.mxu0 0.0
    %1282 = vmatpush1.msra.mxu0 0.0
    %1283 = vmatprep.subr.mxu0 0.0
    %1284 = vmatpush1.msra.mxu0 0.0
    %1285 = vmatprep.subr.mxu0 0.0
    %1286 = vmatpush1.msra.mxu0 0.0
    %1287 = vmatprep.subr.mxu0 0.0
    %1288 = vmatpush1.msra.mxu0 0.0
    %1289 = vmatprep.subr.mxu0 0.0
    %1290 = vmatpush1.msra.mxu0 0.0
    %1291 = vmatprep.subr.mxu0 0.0
    %1292 = vmatpush1.msra.mxu0 0.0
    %1293 = vmatprep.subr.mxu0 0.0
    %1294 = vmatpush1.msra.mxu0 0.0
    %1295 = vmatprep.subr.mxu0 0.0
    %1296 = vmatpush1.msra.mxu0 0.0
    %1297 = vmatprep.subr.mxu0 0.0
    %1298 = vmatpush1.msra.mxu0 0.0
    %1299 = vmatprep.subr.mxu0 0.0
    %1300 = vmatpush1.msra.mxu0 0.0
    %1301 = vmatprep.subr.mxu0 0.0
    %1302 = vmatpush1.msra.mxu0 0.0
    %1303 = vmatprep.subr.mxu0 0.0
    %1304 = vmatpush1.msra.mxu0 0.0
    %1305 = vmatprep.mubr.f32.mxu0 0.0
    %1306 = vmatmul.mubr.f32.gmra.mrb[0].mxu0 %v1239
    %v1307 = vpop.f32.mrb[0].mxu0
    %v1308 = vadd.f32 0.0, %v1307
    %v1309 = vpop.f32.mrb[0].mxu0
    %v1310 = vadd.f32 0.0, %v1309
    %1311 = vdwg.mxu0
    %1313 = vrot.lane.b32.xlu0 %v1182, 32
    %v1314 = vpop.permute.xlu0 %1313
    %v1315 = vsel %vm41, %v1314, 0
    %1317 = vmatprep.subr.mxu0 0.0
    %1318 = vmatpush1.msra.mxu0 %v259
    %1319 = vmatprep.subr.mxu0 0.0
    %1320 = vmatpush1.msra.mxu0 %v260
    %1321 = vmatprep.subr.mxu0 0.0
    %1322 = vmatpush1.msra.mxu0 %v261
    %1323 = vmatprep.subr.mxu0 0.0
    %1324 = vmatpush1.msra.mxu0 %v262
    %1325 = vmatprep.subr.mxu0 0.0
    %1326 = vmatpush1.msra.mxu0 0.0
    %1327 = vmatprep.subr.mxu0 0.0
    %1328 = vmatpush1.msra.mxu0 0.0
    %1329 = vmatprep.subr.mxu0 0.0
    %1330 = vmatpush1.msra.mxu0 0.0
    %1331 = vmatprep.subr.mxu0 0.0
    %1332 = vmatpush1.msra.mxu0 0.0
    %1333 = vmatprep.subr.mxu0 0.0
    %1334 = vmatpush1.msra.mxu0 0.0
    %1335 = vmatprep.subr.mxu0 0.0
    %1336 = vmatpush1.msra.mxu0 0.0
    %1337 = vmatprep.subr.mxu0 0.0
    %1338 = vmatpush1.msra.mxu0 0.0
    %1339 = vmatprep.subr.mxu0 0.0
    %1340 = vmatpush1.msra.mxu0 0.0
    %1341 = vmatprep.subr.mxu0 0.0
    %1342 = vmatpush1.msra.mxu0 0.0
    %1343 = vmatprep.subr.mxu0 0.0
    %1344 = vmatpush1.msra.mxu0 0.0
    %1345 = vmatprep.subr.mxu0 0.0
    %1346 = vmatpush1.msra.mxu0 0.0
    %1347 = vmatprep.subr.mxu0 0.0
    %1348 = vmatpush1.msra.mxu0 0.0
    %1349 = vmatprep.subr.mxu0 0.0
    %1350 = vmatpush1.msra.mxu0 0.0
    %1351 = vmatprep.subr.mxu0 0.0
    %1352 = vmatpush1.msra.mxu0 0.0
    %1353 = vmatprep.subr.mxu0 0.0
    %1354 = vmatpush1.msra.mxu0 0.0
    %1355 = vmatprep.subr.mxu0 0.0
    %1356 = vmatpush1.msra.mxu0 0.0
    %1357 = vmatprep.subr.mxu0 0.0
    %1358 = vmatpush1.msra.mxu0 0.0
    %1359 = vmatprep.subr.mxu0 0.0
    %1360 = vmatpush1.msra.mxu0 0.0
    %1361 = vmatprep.subr.mxu0 0.0
    %1362 = vmatpush1.msra.mxu0 0.0
    %1363 = vmatprep.subr.mxu0 0.0
    %1364 = vmatpush1.msra.mxu0 0.0
    %1365 = vmatprep.subr.mxu0 0.0
    %1366 = vmatpush1.msra.mxu0 0.0
    %1367 = vmatprep.subr.mxu0 0.0
    %1368 = vmatpush1.msra.mxu0 0.0
    %1369 = vmatprep.subr.mxu0 0.0
    %1370 = vmatpush1.msra.mxu0 0.0
    %1371 = vmatprep.subr.mxu0 0.0
    %1372 = vmatpush1.msra.mxu0 0.0
    %1373 = vmatprep.subr.mxu0 0.0
    %1374 = vmatpush1.msra.mxu0 0.0
    %1375 = vmatprep.subr.mxu0 0.0
    %1376 = vmatpush1.msra.mxu0 0.0
    %1377 = vmatprep.subr.mxu0 0.0
    %1378 = vmatpush1.msra.mxu0 0.0
    %1379 = vmatprep.subr.mxu0 0.0
    %1380 = vmatpush1.msra.mxu0 0.0
    %1381 = vmatprep.mubr.f32.mxu0 0.0
    %1382 = vmatmul.mubr.f32.gmra.mrb[0].mxu0 %v1315
    %v1383 = vpop.f32.mrb[0].mxu0
    %v1384 = vadd.f32 0.0, %v1383
    %v1385 = vpop.f32.mrb[0].mxu0
    %1386 = vdwg.mxu0
    %v1387 = vadd.f32 %v1310, %v1384
    %v1388 = vadd.f32 %v1387, %v468
    %v1389 = vtanh.pop %v1388
    %v1390 = vxor.u32 %v1388, 2147483648
    %v1391 = vmul.f32 %v1390, 1.442695
    %v1392 = vpow.pop %v1391
    %v1393 = vadd.f32 %v1392, 1.0
    %v1394 = vrcp.pop %v1393
    %v1395 = vmul.f32 1.0, %v1394
    %v1396 = vsel %vm250, %v1389, %v1395
    %v1397 = vmul.f32 %v1396, %v1176
    %1399 = vrot.lane.b32.xlu0 %v1396, 64
    %v1400 = vpop.permute.xlu0 %1399
    %v1402 = vmul.f32 %v1396, %v1400
    %1404 = vrot.lane.b32.xlu0 %v1402, 32
    %v1405 = vpop.permute.xlu0 %1404
    %v1407 = vadd.f32 %v1397, %v1405
    %v1408 = vtanh.pop %v1407
    %1410 = vrot.lane.b32.xlu0 %v1408, 64
    %v1411 = vpop.permute.xlu0 %1410
    %v1413 = vmul.f32 %v1396, %v1411
    %v1415 = vrot.slane %v1308, 4
    %v1416 = vrot.slane %v1308, 5
    %v1419 = vadd.f32 %v210, %v1415
    %v1420 = vadd.f32 %v215, %v1416
    %v1421 = vadd.f32 %v1419, %v267
    %v1422 = vadd.f32 %v1420, %v267
    %v1423 = vtanh.pop %v1421
    %v1424 = vtanh.pop %v1422
    %v1425 = vxor.u32 %v1421, 2147483648
    %v1426 = vxor.u32 %v1422, 2147483648
    %v1427 = vmul.f32 %v1425, 1.442695
    %v1428 = vpow.pop %v1427
    %v1429 = vmul.f32 %v1426, 1.442695
    %v1430 = vpow.pop %v1429
    %v1431 = vadd.f32 %v1428, 1.0
    %v1432 = vadd.f32 %v1430, 1.0
    %v1433 = vrcp.pop %v1431
    %v1434 = vmul.f32 1.0, %v1433
    %v1435 = vrcp.pop %v1432
    %v1436 = vmul.f32 1.0, %v1435
    %v1439 = vrot.slane %v1423, 4
    %v1440 = vrot.slane %v1424, 3
    %v1441 = vsel %vm288, %v1440, %v1439
    %v1445 = vrot.slane %v1434, 4
    %v1446 = vrot.slane %v1436, 3
    %v1447 = vsel %vm288, %v1446, %v1445
    %v1449 = vsel %vm250, %v1441, %v1447
    %v1450 = vmul.f32 %v1449, %v1229
    %1452 = vrot.lane.b32.xlu0 %v1449, 64
    %v1453 = vpop.permute.xlu0 %1452
    %v1455 = vmul.f32 %v1449, %v1453
    %1457 = vrot.lane.b32.xlu0 %v1455, 32
    %v1458 = vpop.permute.xlu0 %1457
    %v1460 = vadd.f32 %v1450, %v1458
    %v1461 = vtanh.pop %v1460
    %1463 = vrot.lane.b32.xlu0 %v1461, 64
    %v1464 = vpop.permute.xlu0 %1463
    %v1466 = vmul.f32 %v1449, %v1464
    %1468 = vrot.lane.b32.xlu0 %v1466, 32
    %v1469 = vpop.permute.xlu0 %1468
    %v1470 = vsel %vm41, %v1469, 0
    %1472 = vmatprep.subr.mxu0 %v252
    %1473 = vmatpush1.msra.mxu0 %v251
    %1474 = vmatprep.subr.mxu0 %v254
    %1475 = vmatpush1.msra.mxu0 %v253
    %1476 = vmatprep.subr.mxu0 %v256
    %1477 = vmatpush1.msra.mxu0 %v255
    %1478 = vmatprep.subr.mxu0 %v258
    %1479 = vmatpush1.msra.mxu0 %v257
    %1480 = vmatprep.subr.mxu0 0.0
    %1481 = vmatpush1.msra.mxu0 0.0
    %1482 = vmatprep.subr.mxu0 0.0
    %1483 = vmatpush1.msra.mxu0 0.0
    %1484 = vmatprep.subr.mxu0 0.0
    %1485 = vmatpush1.msra.mxu0 0.0
    %1486 = vmatprep.subr.mxu0 0.0
    %1487 = vmatpush1.msra.mxu0 0.0
    %1488 = vmatprep.subr.mxu0 0.0
    %1489 = vmatpush1.msra.mxu0 0.0
    %1490 = vmatprep.subr.mxu0 0.0
    %1491 = vmatpush1.msra.mxu0 0.0
    %1492 = vmatprep.subr.mxu0 0.0
    %1493 = vmatpush1.msra.mxu0 0.0
    %1494 = vmatprep.subr.mxu0 0.0
    %1495 = vmatpush1.msra.mxu0 0.0
    %1496 = vmatprep.subr.mxu0 0.0
    %1497 = vmatpush1.msra.mxu0 0.0
    %1498 = vmatprep.subr.mxu0 0.0
    %1499 = vmatpush1.msra.mxu0 0.0
    %1500 = vmatprep.subr.mxu0 0.0
    %1501 = vmatpush1.msra.mxu0 0.0
    %1502 = vmatprep.subr.mxu0 0.0
    %1503 = vmatpush1.msra.mxu0 0.0
    %1504 = vmatprep.subr.mxu0 0.0
    %1505 = vmatpush1.msra.mxu0 0.0
    %1506 = vmatprep.subr.mxu0 0.0
    %1507 = vmatpush1.msra.mxu0 0.0
    %1508 = vmatprep.subr.mxu0 0.0
    %1509 = vmatpush1.msra.mxu0 0.0
    %1510 = vmatprep.subr.mxu0 0.0
    %1511 = vmatpush1.msra.mxu0 0.0
    %1512 = vmatprep.subr.mxu0 0.0
    %1513 = vmatpush1.msra.mxu0 0.0
    %1514 = vmatprep.subr.mxu0 0.0
    %1515 = vmatpush1.msra.mxu0 0.0
    %1516 = vmatprep.subr.mxu0 0.0
    %1517 = vmatpush1.msra.mxu0 0.0
    %1518 = vmatprep.subr.mxu0 0.0
    %1519 = vmatpush1.msra.mxu0 0.0
    %1520 = vmatprep.subr.mxu0 0.0
    %1521 = vmatpush1.msra.mxu0 0.0
    %1522 = vmatprep.subr.mxu0 0.0
    %1523 = vmatpush1.msra.mxu0 0.0
    %1524 = vmatprep.subr.mxu0 0.0
    %1525 = vmatpush1.msra.mxu0 0.0
    %1526 = vmatprep.subr.mxu0 0.0
    %1527 = vmatpush1.msra.mxu0 0.0
    %1528 = vmatprep.subr.mxu0 0.0
    %1529 = vmatpush1.msra.mxu0 0.0
    %1530 = vmatprep.subr.mxu0 0.0
    %1531 = vmatpush1.msra.mxu0 0.0
    %1532 = vmatprep.subr.mxu0 0.0
    %1533 = vmatpush1.msra.mxu0 0.0
    %1534 = vmatprep.subr.mxu0 0.0
    %1535 = vmatpush1.msra.mxu0 0.0
    %1536 = vmatprep.mubr.f32.mxu0 0.0
    %1537 = vmatmul.mubr.f32.gmra.mrb[0].mxu0 %v1470
    %v1538 = vpop.f32.mrb[0].mxu0
    %v1539 = vadd.f32 0.0, %v1538
    %v1540 = vpop.f32.mrb[0].mxu0
    %v1541 = vadd.f32 0.0, %v1540
    %1542 = vdwg.mxu0
    %1544 = vrot.lane.b32.xlu0 %v1413, 32
    %v1545 = vpop.permute.xlu0 %1544
    %v1546 = vsel %vm41, %v1545, 0
    %1548 = vmatprep.subr.mxu0 0.0
    %1549 = vmatpush1.msra.mxu0 %v259
    %1550 = vmatprep.subr.mxu0 0.0
    %1551 = vmatpush1.msra.mxu0 %v260
    %1552 = vmatprep.subr.mxu0 0.0
    %1553 = vmatpush1.msra.mxu0 %v261
    %1554 = vmatprep.subr.mxu0 0.0
    %1555 = vmatpush1.msra.mxu0 %v262
    %1556 = vmatprep.subr.mxu0 0.0
    %1557 = vmatpush1.msra.mxu0 0.0
    %1558 = vmatprep.subr.mxu0 0.0
    %1559 = vmatpush1.msra.mxu0 0.0
    %1560 = vmatprep.subr.mxu0 0.0
    %1561 = vmatpush1.msra.mxu0 0.0
    %1562 = vmatprep.subr.mxu0 0.0
    %1563 = vmatpush1.msra.mxu0 0.0
    %1564 = vmatprep.subr.mxu0 0.0
    %1565 = vmatpush1.msra.mxu0 0.0
    %1566 = vmatprep.subr.mxu0 0.0
    %1567 = vmatpush1.msra.mxu0 0.0
    %1568 = vmatprep.subr.mxu0 0.0
    %1569 = vmatpush1.msra.mxu0 0.0
    %1570 = vmatprep.subr.mxu0 0.0
    %1571 = vmatpush1.msra.mxu0 0.0
    %1572 = vmatprep.subr.mxu0 0.0
    %1573 = vmatpush1.msra.mxu0 0.0
    %1574 = vmatprep.subr.mxu0 0.0
    %1575 = vmatpush1.msra.mxu0 0.0
    %1576 = vmatprep.subr.mxu0 0.0
    %1577 = vmatpush1.msra.mxu0 0.0
    %1578 = vmatprep.subr.mxu0 0.0
    %1579 = vmatpush1.msra.mxu0 0.0
    %1580 = vmatprep.subr.mxu0 0.0
    %1581 = vmatpush1.msra.mxu0 0.0
    %1582 = vmatprep.subr.mxu0 0.0
    %1583 = vmatpush1.msra.mxu0 0.0
    %1584 = vmatprep.subr.mxu0 0.0
    %1585 = vmatpush1.msra.mxu0 0.0
    %1586 = vmatprep.subr.mxu0 0.0
    %1587 = vmatpush1.msra.mxu0 0.0
    %1588 = vmatprep.subr.mxu0 0.0
    %1589 = vmatpush1.msra.mxu0 0.0
    %1590 = vmatprep.subr.mxu0 0.0
    %1591 = vmatpush1.msra.mxu0 0.0
    %1592 = vmatprep.subr.mxu0 0.0
    %1593 = vmatpush1.msra.mxu0 0.0
    %1594 = vmatprep.subr.mxu0 0.0
    %1595 = vmatpush1.msra.mxu0 0.0
    %1596 = vmatprep.subr.mxu0 0.0
    %1597 = vmatpush1.msra.mxu0 0.0
    %1598 = vmatprep.subr.mxu0 0.0
    %1599 = vmatpush1.msra.mxu0 0.0
    %1600 = vmatprep.subr.mxu0 0.0
    %1601 = vmatpush1.msra.mxu0 0.0
    %1602 = vmatprep.subr.mxu0 0.0
    %1603 = vmatpush1.msra.mxu0 0.0
    %1604 = vmatprep.subr.mxu0 0.0
    %1605 = vmatpush1.msra.mxu0 0.0
    %1606 = vmatprep.subr.mxu0 0.0
    %1607 = vmatpush1.msra.mxu0 0.0
    %1608 = vmatprep.subr.mxu0 0.0
    %1609 = vmatpush1.msra.mxu0 0.0
    %1610 = vmatprep.subr.mxu0 0.0
    %1611 = vmatpush1.msra.mxu0 0.0
    %1612 = vmatprep.mubr.f32.mxu0 0.0
    %1613 = vmatmul.mubr.f32.gmra.mrb[0].mxu0 %v1546
    %v1614 = vpop.f32.mrb[0].mxu0
    %v1615 = vadd.f32 0.0, %v1614
    %v1616 = vpop.f32.mrb[0].mxu0
    %1617 = vdwg.mxu0
    %v1618 = vadd.f32 %v1541, %v1615
    %v1619 = vadd.f32 %v1618, %v468
    %v1620 = vtanh.pop %v1619
    %v1621 = vxor.u32 %v1619, 2147483648
    %v1622 = vmul.f32 %v1621, 1.442695
    %v1623 = vpow.pop %v1622
    %v1624 = vadd.f32 %v1623, 1.0
    %v1625 = vrcp.pop %v1624
    %v1626 = vmul.f32 1.0, %v1625
    %v1627 = vsel %vm250, %v1620, %v1626
    %v1628 = vmul.f32 %v1627, %v1407
    %1630 = vrot.lane.b32.xlu0 %v1627, 64
    %v1631 = vpop.permute.xlu0 %1630
    %v1633 = vmul.f32 %v1627, %v1631
    %1635 = vrot.lane.b32.xlu0 %v1633, 32
    %v1636 = vpop.permute.xlu0 %1635
    %v1638 = vadd.f32 %v1628, %v1636
    %v1639 = vtanh.pop %v1638
    %1641 = vrot.lane.b32.xlu0 %v1639, 64
    %v1642 = vpop.permute.xlu0 %1641
    %v1644 = vmul.f32 %v1627, %v1642
    %v1646 = vrot.slane %v1539, 3
    %v1647 = vrot.slane %v1539, 4
    %v1650 = vadd.f32 %v210, %v1646
    %v1651 = vadd.f32 %v215, %v1647
    %v1652 = vadd.f32 %v1650, %v267
    %v1653 = vadd.f32 %v1651, %v267
    %v1654 = vtanh.pop %v1652
    %v1655 = vtanh.pop %v1653
    %v1656 = vxor.u32 %v1652, 2147483648
    %v1657 = vxor.u32 %v1653, 2147483648
    %v1658 = vmul.f32 %v1656, 1.442695
    %v1659 = vpow.pop %v1658
    %v1660 = vmul.f32 %v1657, 1.442695
    %v1661 = vpow.pop %v1660
    %v1662 = vadd.f32 %v1659, 1.0
    %v1663 = vadd.f32 %v1661, 1.0
    %v1664 = vrcp.pop %v1662
    %v1665 = vmul.f32 1.0, %v1664
    %v1666 = vrcp.pop %v1663
    %v1667 = vmul.f32 1.0, %v1666
    %v1670 = vrot.slane %v1654, 5
    %v1671 = vrot.slane %v1655, 4
    %v1672 = vsel %vm288, %v1671, %v1670
    %v1676 = vrot.slane %v1665, 5
    %v1677 = vrot.slane %v1667, 4
    %v1678 = vsel %vm288, %v1677, %v1676
    %v1680 = vsel %vm250, %v1672, %v1678
    %v1681 = vmul.f32 %v1680, %v1460
    %1683 = vrot.lane.b32.xlu0 %v1680, 64
    %v1684 = vpop.permute.xlu0 %1683
    %v1686 = vmul.f32 %v1680, %v1684
    %1688 = vrot.lane.b32.xlu0 %v1686, 32
    %v1689 = vpop.permute.xlu0 %1688
    %v1691 = vadd.f32 %v1681, %v1689
    %v1692 = vtanh.pop %v1691
    %1694 = vrot.lane.b32.xlu0 %v1692, 64
    %v1695 = vpop.permute.xlu0 %1694
    %v1697 = vmul.f32 %v1680, %v1695
    %1699 = vrot.lane.b32.xlu0 %v1697, 32
    %v1700 = vpop.permute.xlu0 %1699
    %v1701 = vsel %vm41, %v1700, 0
    %1703 = vmatprep.subr.mxu0 %v252
    %1704 = vmatpush1.msra.mxu0 %v251
    %1705 = vmatprep.subr.mxu0 %v254
    %1706 = vmatpush1.msra.mxu0 %v253
    %1707 = vmatprep.subr.mxu0 %v256
    %1708 = vmatpush1.msra.mxu0 %v255
    %1709 = vmatprep.subr.mxu0 %v258
    %1710 = vmatpush1.msra.mxu0 %v257
    %1711 = vmatprep.subr.mxu0 0.0
    %1712 = vmatpush1.msra.mxu0 0.0
    %1713 = vmatprep.subr.mxu0 0.0
    %1714 = vmatpush1.msra.mxu0 0.0
    %1715 = vmatprep.subr.mxu0 0.0
    %1716 = vmatpush1.msra.mxu0 0.0
    %1717 = vmatprep.subr.mxu0 0.0
    %1718 = vmatpush1.msra.mxu0 0.0
    %1719 = vmatprep.subr.mxu0 0.0
    %1720 = vmatpush1.msra.mxu0 0.0
    %1721 = vmatprep.subr.mxu0 0.0
    %1722 = vmatpush1.msra.mxu0 0.0
    %1723 = vmatprep.subr.mxu0 0.0
    %1724 = vmatpush1.msra.mxu0 0.0
    %1725 = vmatprep.subr.mxu0 0.0
    %1726 = vmatpush1.msra.mxu0 0.0
    %1727 = vmatprep.subr.mxu0 0.0
    %1728 = vmatpush1.msra.mxu0 0.0
    %1729 = vmatprep.subr.mxu0 0.0
    %1730 = vmatpush1.msra.mxu0 0.0
    %1731 = vmatprep.subr.mxu0 0.0
    %1732 = vmatpush1.msra.mxu0 0.0
    %1733 = vmatprep.subr.mxu0 0.0
    %1734 = vmatpush1.msra.mxu0 0.0
    %1735 = vmatprep.subr.mxu0 0.0
    %1736 = vmatpush1.msra.mxu0 0.0
    %1737 = vmatprep.subr.mxu0 0.0
    %1738 = vmatpush1.msra.mxu0 0.0
    %1739 = vmatprep.subr.mxu0 0.0
    %1740 = vmatpush1.msra.mxu0 0.0
    %1741 = vmatprep.subr.mxu0 0.0
    %1742 = vmatpush1.msra.mxu0 0.0
    %1743 = vmatprep.subr.mxu0 0.0
    %1744 = vmatpush1.msra.mxu0 0.0
    %1745 = vmatprep.subr.mxu0 0.0
    %1746 = vmatpush1.msra.mxu0 0.0
    %1747 = vmatprep.subr.mxu0 0.0
    %1748 = vmatpush1.msra.mxu0 0.0
    %1749 = vmatprep.subr.mxu0 0.0
    %1750 = vmatpush1.msra.mxu0 0.0
    %1751 = vmatprep.subr.mxu0 0.0
    %1752 = vmatpush1.msra.mxu0 0.0
    %1753 = vmatprep.subr.mxu0 0.0
    %1754 = vmatpush1.msra.mxu0 0.0
    %1755 = vmatprep.subr.mxu0 0.0
    %1756 = vmatpush1.msra.mxu0 0.0
    %1757 = vmatprep.subr.mxu0 0.0
    %1758 = vmatpush1.msra.mxu0 0.0
    %1759 = vmatprep.subr.mxu0 0.0
    %1760 = vmatpush1.msra.mxu0 0.0
    %1761 = vmatprep.subr.mxu0 0.0
    %1762 = vmatpush1.msra.mxu0 0.0
    %1763 = vmatprep.subr.mxu0 0.0
    %1764 = vmatpush1.msra.mxu0 0.0
    %1765 = vmatprep.subr.mxu0 0.0
    %1766 = vmatpush1.msra.mxu0 0.0
    %1767 = vmatprep.mubr.f32.mxu0 0.0
    %1768 = vmatmul.mubr.f32.gmra.mrb[0].mxu0 %v1701
    %v1769 = vpop.f32.mrb[0].mxu0
    %v1770 = vadd.f32 0.0, %v1769
    %v1771 = vpop.f32.mrb[0].mxu0
    %v1772 = vadd.f32 0.0, %v1771
    %1773 = vdwg.mxu0
    %1775 = vrot.lane.b32.xlu0 %v1644, 32
    %v1776 = vpop.permute.xlu0 %1775
    %v1777 = vsel %vm41, %v1776, 0
    %1779 = vmatprep.subr.mxu0 0.0
    %1780 = vmatpush1.msra.mxu0 %v259
    %1781 = vmatprep.subr.mxu0 0.0
    %1782 = vmatpush1.msra.mxu0 %v260
    %1783 = vmatprep.subr.mxu0 0.0
    %1784 = vmatpush1.msra.mxu0 %v261
    %1785 = vmatprep.subr.mxu0 0.0
    %1786 = vmatpush1.msra.mxu0 %v262
    %1787 = vmatprep.subr.mxu0 0.0
    %1788 = vmatpush1.msra.mxu0 0.0
    %1789 = vmatprep.subr.mxu0 0.0
    %1790 = vmatpush1.msra.mxu0 0.0
    %1791 = vmatprep.subr.mxu0 0.0
    %1792 = vmatpush1.msra.mxu0 0.0
    %1793 = vmatprep.subr.mxu0 0.0
    %1794 = vmatpush1.msra.mxu0 0.0
    %1795 = vmatprep.subr.mxu0 0.0
    %1796 = vmatpush1.msra.mxu0 0.0
    %1797 = vmatprep.subr.mxu0 0.0
    %1798 = vmatpush1.msra.mxu0 0.0
    %1799 = vmatprep.subr.mxu0 0.0
    %1800 = vmatpush1.msra.mxu0 0.0
    %1801 = vmatprep.subr.mxu0 0.0
    %1802 = vmatpush1.msra.mxu0 0.0
    %1803 = vmatprep.subr.mxu0 0.0
    %1804 = vmatpush1.msra.mxu0 0.0
    %1805 = vmatprep.subr.mxu0 0.0
    %1806 = vmatpush1.msra.mxu0 0.0
    %1807 = vmatprep.subr.mxu0 0.0
    %1808 = vmatpush1.msra.mxu0 0.0
    %1809 = vmatprep.subr.mxu0 0.0
    %1810 = vmatpush1.msra.mxu0 0.0
    %1811 = vmatprep.subr.mxu0 0.0
    %1812 = vmatpush1.msra.mxu0 0.0
    %1813 = vmatprep.subr.mxu0 0.0
    %1814 = vmatpush1.msra.mxu0 0.0
    %1815 = vmatprep.subr.mxu0 0.0
    %1816 = vmatpush1.msra.mxu0 0.0
    %1817 = vmatprep.subr.mxu0 0.0
    %1818 = vmatpush1.msra.mxu0 0.0
    %1819 = vmatprep.subr.mxu0 0.0
    %1820 = vmatpush1.msra.mxu0 0.0
    %1821 = vmatprep.subr.mxu0 0.0
    %1822 = vmatpush1.msra.mxu0 0.0
    %1823 = vmatprep.subr.mxu0 0.0
    %1824 = vmatpush1.msra.mxu0 0.0
    %1825 = vmatprep.subr.mxu0 0.0
    %1826 = vmatpush1.msra.mxu0 0.0
    %1827 = vmatprep.subr.mxu0 0.0
    %1828 = vmatpush1.msra.mxu0 0.0
    %1829 = vmatprep.subr.mxu0 0.0
    %1830 = vmatpush1.msra.mxu0 0.0
    %1831 = vmatprep.subr.mxu0 0.0
    %1832 = vmatpush1.msra.mxu0 0.0
    %1833 = vmatprep.subr.mxu0 0.0
    %1834 = vmatpush1.msra.mxu0 0.0
    %1835 = vmatprep.subr.mxu0 0.0
    %1836 = vmatpush1.msra.mxu0 0.0
    %1837 = vmatprep.subr.mxu0 0.0
    %1838 = vmatpush1.msra.mxu0 0.0
    %1839 = vmatprep.subr.mxu0 0.0
    %1840 = vmatpush1.msra.mxu0 0.0
    %1841 = vmatprep.subr.mxu0 0.0
    %1842 = vmatpush1.msra.mxu0 0.0
    %1843 = vmatprep.mubr.f32.mxu0 0.0
    %1844 = vmatmul.mubr.f32.gmra.mrb[0].mxu0 %v1777
    %v1845 = vpop.f32.mrb[0].mxu0
    %v1846 = vadd.f32 0.0, %v1845
    %v1847 = vpop.f32.mrb[0].mxu0
    %1848 = vdwg.mxu0
    %v1849 = vadd.f32 %v1772, %v1846
    %v1850 = vadd.f32 %v1849, %v468
    %v1851 = vtanh.pop %v1850
    %v1852 = vxor.u32 %v1850, 2147483648
    %v1853 = vmul.f32 %v1852, 1.442695
    %v1854 = vpow.pop %v1853
    %v1855 = vadd.f32 %v1854, 1.0
    %v1856 = vrcp.pop %v1855
    %v1857 = vmul.f32 1.0, %v1856
    %v1858 = vsel %vm250, %v1851, %v1857
    %v1859 = vmul.f32 %v1858, %v1638
    %1861 = vrot.lane.b32.xlu0 %v1858, 64
    %v1862 = vpop.permute.xlu0 %1861
    %v1864 = vmul.f32 %v1858, %v1862
    %1866 = vrot.lane.b32.xlu0 %v1864, 32
    %v1867 = vpop.permute.xlu0 %1866
    %v1869 = vadd.f32 %v1859, %v1867
    %v1870 = vtanh.pop %v1869
    %1872 = vrot.lane.b32.xlu0 %v1870, 64
    %v1873 = vpop.permute.xlu0 %1872
    %v1875 = vmul.f32 %v1858, %v1873
    %v1877 = vrot.slane %v1770, 2
    %v1878 = vrot.slane %v1770, 3
    %v1881 = vadd.f32 %v210, %v1877
    %v1882 = vadd.f32 %v215, %v1878
    %v1883 = vadd.f32 %v1881, %v267
    %v1884 = vadd.f32 %v1882, %v267
    %v1885 = vtanh.pop %v1883
    %v1886 = vtanh.pop %v1884
    %v1887 = vxor.u32 %v1883, 2147483648
    %v1888 = vxor.u32 %v1884, 2147483648
    %v1889 = vmul.f32 %v1887, 1.442695
    %v1890 = vpow.pop %v1889
    %v1891 = vmul.f32 %v1888, 1.442695
    %v1892 = vpow.pop %v1891
    %v1893 = vadd.f32 %v1890, 1.0
    %v1894 = vadd.f32 %v1892, 1.0
    %v1895 = vrcp.pop %v1893
    %v1896 = vmul.f32 1.0, %v1895
    %v1897 = vrcp.pop %v1894
    %v1898 = vmul.f32 1.0, %v1897
    %v1901 = vrot.slane %v1885, 6
    %v1902 = vrot.slane %v1886, 5
    %v1903 = vsel %vm288, %v1902, %v1901
    %v1907 = vrot.slane %v1896, 6
    %v1908 = vrot.slane %v1898, 5
    %v1909 = vsel %vm288, %v1908, %v1907
    %v1911 = vsel %vm250, %v1903, %v1909
    %v1912 = vmul.f32 %v1911, %v1691
    %1914 = vrot.lane.b32.xlu0 %v1911, 64
    %v1915 = vpop.permute.xlu0 %1914
    %v1917 = vmul.f32 %v1911, %v1915
    %1919 = vrot.lane.b32.xlu0 %v1917, 32
    %v1920 = vpop.permute.xlu0 %1919
    %v1922 = vadd.f32 %v1912, %v1920
    %v1923 = vtanh.pop %v1922
    %1925 = vrot.lane.b32.xlu0 %v1923, 64
    %v1926 = vpop.permute.xlu0 %1925
    %v1928 = vmul.f32 %v1911, %v1926
    %1930 = vrot.lane.b32.xlu0 %v1928, 32
    %v1931 = vpop.permute.xlu0 %1930
    %v1932 = vsel %vm41, %v1931, 0
    %1934 = vmatprep.subr.mxu0 %v252
    %1935 = vmatpush1.msra.mxu0 %v251
    %1936 = vmatprep.subr.mxu0 %v254
    %1937 = vmatpush1.msra.mxu0 %v253
    %1938 = vmatprep.subr.mxu0 %v256
    %1939 = vmatpush1.msra.mxu0 %v255
    %1940 = vmatprep.subr.mxu0 %v258
    %1941 = vmatpush1.msra.mxu0 %v257
    %1942 = vmatprep.subr.mxu0 0.0
    %1943 = vmatpush1.msra.mxu0 0.0
    %1944 = vmatprep.subr.mxu0 0.0
    %1945 = vmatpush1.msra.mxu0 0.0
    %1946 = vmatprep.subr.mxu0 0.0
    %1947 = vmatpush1.msra.mxu0 0.0
    %1948 = vmatprep.subr.mxu0 0.0
    %1949 = vmatpush1.msra.mxu0 0.0
    %1950 = vmatprep.subr.mxu0 0.0
    %1951 = vmatpush1.msra.mxu0 0.0
    %1952 = vmatprep.subr.mxu0 0.0
    %1953 = vmatpush1.msra.mxu0 0.0
    %1954 = vmatprep.subr.mxu0 0.0
    %1955 = vmatpush1.msra.mxu0 0.0
    %1956 = vmatprep.subr.mxu0 0.0
    %1957 = vmatpush1.msra.mxu0 0.0
    %1958 = vmatprep.subr.mxu0 0.0
    %1959 = vmatpush1.msra.mxu0 0.0
    %1960 = vmatprep.subr.mxu0 0.0
    %1961 = vmatpush1.msra.mxu0 0.0
    %1962 = vmatprep.subr.mxu0 0.0
    %1963 = vmatpush1.msra.mxu0 0.0
    %1964 = vmatprep.subr.mxu0 0.0
    %1965 = vmatpush1.msra.mxu0 0.0
    %1966 = vmatprep.subr.mxu0 0.0
    %1967 = vmatpush1.msra.mxu0 0.0
    %1968 = vmatprep.subr.mxu0 0.0
    %1969 = vmatpush1.msra.mxu0 0.0
    %1970 = vmatprep.subr.mxu0 0.0
    %1971 = vmatpush1.msra.mxu0 0.0
    %1972 = vmatprep.subr.mxu0 0.0
    %1973 = vmatpush1.msra.mxu0 0.0
    %1974 = vmatprep.subr.mxu0 0.0
    %1975 = vmatpush1.msra.mxu0 0.0
    %1976 = vmatprep.subr.mxu0 0.0
    %1977 = vmatpush1.msra.mxu0 0.0
    %1978 = vmatprep.subr.mxu0 0.0
    %1979 = vmatpush1.msra.mxu0 0.0
    %1980 = vmatprep.subr.mxu0 0.0
    %1981 = vmatpush1.msra.mxu0 0.0
    %1982 = vmatprep.subr.mxu0 0.0
    %1983 = vmatpush1.msra.mxu0 0.0
    %1984 = vmatprep.subr.mxu0 0.0
    %1985 = vmatpush1.msra.mxu0 0.0
    %1986 = vmatprep.subr.mxu0 0.0
    %1987 = vmatpush1.msra.mxu0 0.0
    %1988 = vmatprep.subr.mxu0 0.0
    %1989 = vmatpush1.msra.mxu0 0.0
    %1990 = vmatprep.subr.mxu0 0.0
    %1991 = vmatpush1.msra.mxu0 0.0
    %1992 = vmatprep.subr.mxu0 0.0
    %1993 = vmatpush1.msra.mxu0 0.0
    %1994 = vmatprep.subr.mxu0 0.0
    %1995 = vmatpush1.msra.mxu0 0.0
    %1996 = vmatprep.subr.mxu0 0.0
    %1997 = vmatpush1.msra.mxu0 0.0
    %1998 = vmatprep.mubr.f32.mxu0 0.0
    %1999 = vmatmul.mubr.f32.gmra.mrb[0].mxu0 %v1932
    %v2000 = vpop.f32.mrb[0].mxu0
    %v2001 = vadd.f32 0.0, %v2000
    %v2002 = vpop.f32.mrb[0].mxu0
    %v2003 = vadd.f32 0.0, %v2002
    %2004 = vdwg.mxu0
    %2006 = vrot.lane.b32.xlu0 %v1875, 32
    %v2007 = vpop.permute.xlu0 %2006
    %v2008 = vsel %vm41, %v2007, 0
    %2010 = vmatprep.subr.mxu0 0.0
    %2011 = vmatpush1.msra.mxu0 %v259
    %2012 = vmatprep.subr.mxu0 0.0
    %2013 = vmatpush1.msra.mxu0 %v260
    %2014 = vmatprep.subr.mxu0 0.0
    %2015 = vmatpush1.msra.mxu0 %v261
    %2016 = vmatprep.subr.mxu0 0.0
    %2017 = vmatpush1.msra.mxu0 %v262
    %2018 = vmatprep.subr.mxu0 0.0
    %2019 = vmatpush1.msra.mxu0 0.0
    %2020 = vmatprep.subr.mxu0 0.0
    %2021 = vmatpush1.msra.mxu0 0.0
    %2022 = vmatprep.subr.mxu0 0.0
    %2023 = vmatpush1.msra.mxu0 0.0
    %2024 = vmatprep.subr.mxu0 0.0
    %2025 = vmatpush1.msra.mxu0 0.0
    %2026 = vmatprep.subr.mxu0 0.0
    %2027 = vmatpush1.msra.mxu0 0.0
    %2028 = vmatprep.subr.mxu0 0.0
    %2029 = vmatpush1.msra.mxu0 0.0
    %2030 = vmatprep.subr.mxu0 0.0
    %2031 = vmatpush1.msra.mxu0 0.0
    %2032 = vmatprep.subr.mxu0 0.0
    %2033 = vmatpush1.msra.mxu0 0.0
    %2034 = vmatprep.subr.mxu0 0.0
    %2035 = vmatpush1.msra.mxu0 0.0
    %2036 = vmatprep.subr.mxu0 0.0
    %2037 = vmatpush1.msra.mxu0 0.0
    %2038 = vmatprep.subr.mxu0 0.0
    %2039 = vmatpush1.msra.mxu0 0.0
    %2040 = vmatprep.subr.mxu0 0.0
    %2041 = vmatpush1.msra.mxu0 0.0
    %2042 = vmatprep.subr.mxu0 0.0
    %2043 = vmatpush1.msra.mxu0 0.0
    %2044 = vmatprep.subr.mxu0 0.0
    %2045 = vmatpush1.msra.mxu0 0.0
    %2046 = vmatprep.subr.mxu0 0.0
    %2047 = vmatpush1.msra.mxu0 0.0
    %2048 = vmatprep.subr.mxu0 0.0
    %2049 = vmatpush1.msra.mxu0 0.0
    %2050 = vmatprep.subr.mxu0 0.0
    %2051 = vmatpush1.msra.mxu0 0.0
    %2052 = vmatprep.subr.mxu0 0.0
    %2053 = vmatpush1.msra.mxu0 0.0
    %2054 = vmatprep.subr.mxu0 0.0
    %2055 = vmatpush1.msra.mxu0 0.0
    %2056 = vmatprep.subr.mxu0 0.0
    %2057 = vmatpush1.msra.mxu0 0.0
    %2058 = vmatprep.subr.mxu0 0.0
    %2059 = vmatpush1.msra.mxu0 0.0
    %2060 = vmatprep.subr.mxu0 0.0
    %2061 = vmatpush1.msra.mxu0 0.0
    %2062 = vmatprep.subr.mxu0 0.0
    %2063 = vmatpush1.msra.mxu0 0.0
    %2064 = vmatprep.subr.mxu0 0.0
    %2065 = vmatpush1.msra.mxu0 0.0
    %2066 = vmatprep.subr.mxu0 0.0
    %2067 = vmatpush1.msra.mxu0 0.0
    %2068 = vmatprep.subr.mxu0 0.0
    %2069 = vmatpush1.msra.mxu0 0.0
    %2070 = vmatprep.subr.mxu0 0.0
    %2071 = vmatpush1.msra.mxu0 0.0
    %2072 = vmatprep.subr.mxu0 0.0
    %2073 = vmatpush1.msra.mxu0 0.0
    %2074 = vmatprep.mubr.f32.mxu0 0.0
    %2075 = vmatmul.mubr.f32.gmra.mrb[0].mxu0 %v2008
    %v2076 = vpop.f32.mrb[0].mxu0
    %v2077 = vadd.f32 0.0, %v2076
    %v2078 = vpop.f32.mrb[0].mxu0
    %2079 = vdwg.mxu0
    %v2080 = vadd.f32 %v2003, %v2077
    %v2081 = vadd.f32 %v2080, %v468
    %v2082 = vtanh.pop %v2081
    %v2083 = vxor.u32 %v2081, 2147483648
    %v2084 = vmul.f32 %v2083, 1.442695
    %v2085 = vpow.pop %v2084
    %v2086 = vadd.f32 %v2085, 1.0
    %v2087 = vrcp.pop %v2086
    %v2088 = vmul.f32 1.0, %v2087
    %v2089 = vsel %vm250, %v2082, %v2088
    %v2090 = vmul.f32 %v2089, %v1869
    %2092 = vrot.lane.b32.xlu0 %v2089, 64
    %v2093 = vpop.permute.xlu0 %2092
    %v2095 = vmul.f32 %v2089, %v2093
    %2097 = vrot.lane.b32.xlu0 %v2095, 32
    %v2098 = vpop.permute.xlu0 %2097
    %v2100 = vadd.f32 %v2090, %v2098
    %v2101 = vtanh.pop %v2100
    %2103 = vrot.lane.b32.xlu0 %v2101, 64
    %v2104 = vpop.permute.xlu0 %2103
    %v2106 = vmul.f32 %v2089, %v2104
    %v2108 = vrot.slane %v2001, 1
    %v2109 = vrot.slane %v2001, 2
    %v2112 = vadd.f32 %v210, %v2108
    %v2113 = vadd.f32 %v215, %v2109
    %v2114 = vadd.f32 %v2112, %v267
    %v2115 = vadd.f32 %v2113, %v267
    %v2116 = vtanh.pop %v2114
    %v2117 = vtanh.pop %v2115
    %v2118 = vxor.u32 %v2114, 2147483648
    %v2119 = vxor.u32 %v2115, 2147483648
    %v2120 = vmul.f32 %v2118, 1.442695
    %v2121 = vpow.pop %v2120
    %v2122 = vmul.f32 %v2119, 1.442695
    %v2123 = vpow.pop %v2122
    %v2124 = vadd.f32 %v2121, 1.0
    %v2125 = vadd.f32 %v2123, 1.0
    %v2126 = vrcp.pop %v2124
    %v2127 = vmul.f32 1.0, %v2126
    %v2128 = vrcp.pop %v2125
    %v2129 = vmul.f32 1.0, %v2128
    %v2132 = vrot.slane %v2116, 7
    %v2133 = vrot.slane %v2117, 6
    %v2134 = vsel %vm288, %v2133, %v2132
    %v2138 = vrot.slane %v2127, 7
    %v2139 = vrot.slane %v2129, 6
    %v2140 = vsel %vm288, %v2139, %v2138
    %v2142 = vsel %vm250, %v2134, %v2140
    %v2143 = vmul.f32 %v2142, %v1922
    %2145 = vrot.lane.b32.xlu0 %v2142, 64
    %v2146 = vpop.permute.xlu0 %2145
    %v2148 = vmul.f32 %v2142, %v2146
    %2150 = vrot.lane.b32.xlu0 %v2148, 32
    %v2151 = vpop.permute.xlu0 %2150
    %v2153 = vadd.f32 %v2143, %v2151
    %v2154 = vtanh.pop %v2153
    %2156 = vrot.lane.b32.xlu0 %v2154, 64
    %v2157 = vpop.permute.xlu0 %2156
    %v2159 = vmul.f32 %v2142, %v2157
    %2161 = vrot.lane.b32.xlu0 %v2159, 32
    %v2162 = vpop.permute.xlu0 %2161
    %v2163 = vsel %vm41, %v2162, 0
    %2165 = vmatprep.subr.mxu0 %v252
    %2166 = vmatpush1.msra.mxu0 %v251
    %2167 = vmatprep.subr.mxu0 %v254
    %2168 = vmatpush1.msra.mxu0 %v253
    %2169 = vmatprep.subr.mxu0 %v256
    %2170 = vmatpush1.msra.mxu0 %v255
    %2171 = vmatprep.subr.mxu0 %v258
    %2172 = vmatpush1.msra.mxu0 %v257
    %2173 = vmatprep.subr.mxu0 0.0
    %2174 = vmatpush1.msra.mxu0 0.0
    %2175 = vmatprep.subr.mxu0 0.0
    %2176 = vmatpush1.msra.mxu0 0.0
    %2177 = vmatprep.subr.mxu0 0.0
    %2178 = vmatpush1.msra.mxu0 0.0
    %2179 = vmatprep.subr.mxu0 0.0
    %2180 = vmatpush1.msra.mxu0 0.0
    %2181 = vmatprep.subr.mxu0 0.0
    %2182 = vmatpush1.msra.mxu0 0.0
    %2183 = vmatprep.subr.mxu0 0.0
    %2184 = vmatpush1.msra.mxu0 0.0
    %2185 = vmatprep.subr.mxu0 0.0
    %2186 = vmatpush1.msra.mxu0 0.0
    %2187 = vmatprep.subr.mxu0 0.0
    %2188 = vmatpush1.msra.mxu0 0.0
    %2189 = vmatprep.subr.mxu0 0.0
    %2190 = vmatpush1.msra.mxu0 0.0
    %2191 = vmatprep.subr.mxu0 0.0
    %2192 = vmatpush1.msra.mxu0 0.0
    %2193 = vmatprep.subr.mxu0 0.0
    %2194 = vmatpush1.msra.mxu0 0.0
    %2195 = vmatprep.subr.mxu0 0.0
    %2196 = vmatpush1.msra.mxu0 0.0
    %2197 = vmatprep.subr.mxu0 0.0
    %2198 = vmatpush1.msra.mxu0 0.0
    %2199 = vmatprep.subr.mxu0 0.0
    %2200 = vmatpush1.msra.mxu0 0.0
    %2201 = vmatprep.subr.mxu0 0.0
    %2202 = vmatpush1.msra.mxu0 0.0
    %2203 = vmatprep.subr.mxu0 0.0
    %2204 = vmatpush1.msra.mxu0 0.0
    %2205 = vmatprep.subr.mxu0 0.0
    %2206 = vmatpush1.msra.mxu0 0.0
    %2207 = vmatprep.subr.mxu0 0.0
    %2208 = vmatpush1.msra.mxu0 0.0
    %2209 = vmatprep.subr.mxu0 0.0
    %2210 = vmatpush1.msra.mxu0 0.0
    %2211 = vmatprep.subr.mxu0 0.0
    %2212 = vmatpush1.msra.mxu0 0.0
    %2213 = vmatprep.subr.mxu0 0.0
    %2214 = vmatpush1.msra.mxu0 0.0
    %2215 = vmatprep.subr.mxu0 0.0
    %2216 = vmatpush1.msra.mxu0 0.0
    %2217 = vmatprep.subr.mxu0 0.0
    %2218 = vmatpush1.msra.mxu0 0.0
    %2219 = vmatprep.subr.mxu0 0.0
    %2220 = vmatpush1.msra.mxu0 0.0
    %2221 = vmatprep.subr.mxu0 0.0
    %2222 = vmatpush1.msra.mxu0 0.0
    %2223 = vmatprep.subr.mxu0 0.0
    %2224 = vmatpush1.msra.mxu0 0.0
    %2225 = vmatprep.subr.mxu0 0.0
    %2226 = vmatpush1.msra.mxu0 0.0
    %2227 = vmatprep.subr.mxu0 0.0
    %2228 = vmatpush1.msra.mxu0 0.0
    %2229 = vmatprep.mubr.f32.mxu0 0.0
    %2230 = vmatmul.mubr.f32.gmra.mrb[0].mxu0 %v2163
    %v2231 = vpop.f32.mrb[0].mxu0
    %v2232 = vpop.f32.mrb[0].mxu0
    %v2233 = vadd.f32 0.0, %v2232
    %2234 = vdwg.mxu0
    %2236 = vrot.lane.b32.xlu0 %v2106, 32
    %v2237 = vpop.permute.xlu0 %2236
    %v2238 = vsel %vm41, %v2237, 0
    %2240 = vmatprep.subr.mxu0 0.0
    %2241 = vmatpush1.msra.mxu0 %v259
    %2242 = vmatprep.subr.mxu0 0.0
    %2243 = vmatpush1.msra.mxu0 %v260
    %2244 = vmatprep.subr.mxu0 0.0
    %2245 = vmatpush1.msra.mxu0 %v261
    %2246 = vmatprep.subr.mxu0 0.0
    %2247 = vmatpush1.msra.mxu0 %v262
    %2248 = vmatprep.subr.mxu0 0.0
    %2249 = vmatpush1.msra.mxu0 0.0
    %2250 = vmatprep.subr.mxu0 0.0
    %2251 = vmatpush1.msra.mxu0 0.0
    %2252 = vmatprep.subr.mxu0 0.0
    %2253 = vmatpush1.msra.mxu0 0.0
    %2254 = vmatprep.subr.mxu0 0.0
    %2255 = vmatpush1.msra.mxu0 0.0
    %2256 = vmatprep.subr.mxu0 0.0
    %2257 = vmatpush1.msra.mxu0 0.0
    %2258 = vmatprep.subr.mxu0 0.0
    %2259 = vmatpush1.msra.mxu0 0.0
    %2260 = vmatprep.subr.mxu0 0.0
    %2261 = vmatpush1.msra.mxu0 0.0
    %2262 = vmatprep.subr.mxu0 0.0
    %2263 = vmatpush1.msra.mxu0 0.0
    %2264 = vmatprep.subr.mxu0 0.0
    %2265 = vmatpush1.msra.mxu0 0.0
    %2266 = vmatprep.subr.mxu0 0.0
    %2267 = vmatpush1.msra.mxu0 0.0
    %2268 = vmatprep.subr.mxu0 0.0
    %2269 = vmatpush1.msra.mxu0 0.0
    %2270 = vmatprep.subr.mxu0 0.0
    %2271 = vmatpush1.msra.mxu0 0.0
    %2272 = vmatprep.subr.mxu0 0.0
    %2273 = vmatpush1.msra.mxu0 0.0
    %2274 = vmatprep.subr.mxu0 0.0
    %2275 = vmatpush1.msra.mxu0 0.0
    %2276 = vmatprep.subr.mxu0 0.0
    %2277 = vmatpush1.msra.mxu0 0.0
    %2278 = vmatprep.subr.mxu0 0.0
    %2279 = vmatpush1.msra.mxu0 0.0
    %2280 = vmatprep.subr.mxu0 0.0
    %2281 = vmatpush1.msra.mxu0 0.0
    %2282 = vmatprep.subr.mxu0 0.0
    %2283 = vmatpush1.msra.mxu0 0.0
    %2284 = vmatprep.subr.mxu0 0.0
    %2285 = vmatpush1.msra.mxu0 0.0
    %2286 = vmatprep.subr.mxu0 0.0
    %2287 = vmatpush1.msra.mxu0 0.0
    %2288 = vmatprep.subr.mxu0 0.0
    %2289 = vmatpush1.msra.mxu0 0.0
    %2290 = vmatprep.subr.mxu0 0.0
    %2291 = vmatpush1.msra.mxu0 0.0
    %2292 = vmatprep.subr.mxu0 0.0
    %2293 = vmatpush1.msra.mxu0 0.0
    %2294 = vmatprep.subr.mxu0 0.0
    %2295 = vmatpush1.msra.mxu0 0.0
    %2296 = vmatprep.subr.mxu0 0.0
    %2297 = vmatpush1.msra.mxu0 0.0
    %2298 = vmatprep.subr.mxu0 0.0
    %2299 = vmatpush1.msra.mxu0 0.0
    %2300 = vmatprep.subr.mxu0 0.0
    %2301 = vmatpush1.msra.mxu0 0.0
    %2302 = vmatprep.subr.mxu0 0.0
    %2303 = vmatpush1.msra.mxu0 0.0
    %2304 = vmatprep.mubr.f32.mxu0 0.0
    %2305 = vmatmul.mubr.f32.gmra.mrb[0].mxu0 %v2238
    %v2306 = vpop.f32.mrb[0].mxu0
    %v2307 = vadd.f32 0.0, %v2306
    %v2308 = vpop.f32.mrb[0].mxu0
    %2309 = vdwg.mxu0
    %v2310 = vadd.f32 %v2233, %v2307
    %v2311 = vadd.f32 %v2310, %v468
    %v2312 = vtanh.pop %v2311
    %v2313 = vxor.u32 %v2311, 2147483648
    %v2314 = vmul.f32 %v2313, 1.442695
    %v2315 = vpow.pop %v2314
    %v2316 = vadd.f32 %v2315, 1.0
    %v2317 = vrcp.pop %v2316
    %v2318 = vmul.f32 1.0, %v2317
    %v2319 = vsel %vm250, %v2312, %v2318
    %v2320 = vmul.f32 %v2319, %v2100
    %2322 = vrot.lane.b32.xlu0 %v2319, 64
    %v2323 = vpop.permute.xlu0 %2322
    %v2325 = vmul.f32 %v2319, %v2323
    %2327 = vrot.lane.b32.xlu0 %v2325, 32
    %v2328 = vpop.permute.xlu0 %2327
    %v2330 = vadd.f32 %v2320, %v2328
    %v2331 = vtanh.pop %v2330
    %2333 = vrot.lane.b32.xlu0 %v2331, 64
    %v2334 = vpop.permute.xlu0 %2333
    %v2336 = vmul.f32 %v2319, %v2334
    %v2337 = vld [vmem:[%s8] sm:$0xff]
    %v2338 = vld [vmem:[%s8 + $0x8] sm:$0xff]
    %v2339 = vld [vmem:[%s8 + $0x10] sm:$0xff]
    %v2340 = vld [vmem:[%s8 + $0x18] sm:$0xff]
    %v2341 = vld [vmem:[%s9] sm:$0x1]
    %v2343 = vlaneseq
    %v2344 = vshrl.u32 %v2343, 7
    %v2345 = vsub.s32 0, %v2344
    %v2346 = vrot.slane %v2341, %v2345
    %2349 = vrot.lane.b32.xlu0 %v2336, 32
    %v2350 = vpop.permute.xlu0 %2349
    %v2351 = vsel %vm41, %v2350, 0
    %2353 = vmatprep.subr.mxu0 0.0
    %2354 = vmatpush1.msra.mxu0 %v2337
    %2355 = vmatprep.subr.mxu0 0.0
    %2356 = vmatpush1.msra.mxu0 %v2338
    %2357 = vmatprep.subr.mxu0 0.0
    %2358 = vmatpush1.msra.mxu0 %v2339
    %2359 = vmatprep.subr.mxu0 0.0
    %2360 = vmatpush1.msra.mxu0 %v2340
    %2361 = vmatprep.subr.mxu0 0.0
    %2362 = vmatpush1.msra.mxu0 0.0
    %2363 = vmatprep.subr.mxu0 0.0
    %2364 = vmatpush1.msra.mxu0 0.0
    %2365 = vmatprep.subr.mxu0 0.0
    %2366 = vmatpush1.msra.mxu0 0.0
    %2367 = vmatprep.subr.mxu0 0.0
    %2368 = vmatpush1.msra.mxu0 0.0
    %2369 = vmatprep.subr.mxu0 0.0
    %2370 = vmatpush1.msra.mxu0 0.0
    %2371 = vmatprep.subr.mxu0 0.0
    %2372 = vmatpush1.msra.mxu0 0.0
    %2373 = vmatprep.subr.mxu0 0.0
    %2374 = vmatpush1.msra.mxu0 0.0
    %2375 = vmatprep.subr.mxu0 0.0
    %2376 = vmatpush1.msra.mxu0 0.0
    %2377 = vmatprep.subr.mxu0 0.0
    %2378 = vmatpush1.msra.mxu0 0.0
    %2379 = vmatprep.subr.mxu0 0.0
    %2380 = vmatpush1.msra.mxu0 0.0
    %2381 = vmatprep.subr.mxu0 0.0
    %2382 = vmatpush1.msra.mxu0 0.0
    %2383 = vmatprep.subr.mxu0 0.0
    %2384 = vmatpush1.msra.mxu0 0.0
    %2385 = vmatprep.subr.mxu0 0.0
    %2386 = vmatpush1.msra.mxu0 0.0
    %2387 = vmatprep.subr.mxu0 0.0
    %2388 = vmatpush1.msra.mxu0 0.0
    %2389 = vmatprep.subr.mxu0 0.0
    %2390 = vmatpush1.msra.mxu0 0.0
    %2391 = vmatprep.subr.mxu0 0.0
    %2392 = vmatpush1.msra.mxu0 0.0
    %2393 = vmatprep.subr.mxu0 0.0
    %2394 = vmatpush1.msra.mxu0 0.0
    %2395 = vmatprep.subr.mxu0 0.0
    %2396 = vmatpush1.msra.mxu0 0.0
    %2397 = vmatprep.subr.mxu0 0.0
    %2398 = vmatpush1.msra.mxu0 0.0
    %2399 = vmatprep.subr.mxu0 0.0
    %2400 = vmatpush1.msra.mxu0 0.0
    %2401 = vmatprep.subr.mxu0 0.0
    %2402 = vmatpush1.msra.mxu0 0.0
    %2403 = vmatprep.subr.mxu0 0.0
    %2404 = vmatpush1.msra.mxu0 0.0
    %2405 = vmatprep.subr.mxu0 0.0
    %2406 = vmatpush1.msra.mxu0 0.0
    %2407 = vmatprep.subr.mxu0 0.0
    %2408 = vmatpush1.msra.mxu0 0.0
    %2409 = vmatprep.subr.mxu0 0.0
    %2410 = vmatpush1.msra.mxu0 0.0
    %2411 = vmatprep.subr.mxu0 0.0
    %2412 = vmatpush1.msra.mxu0 0.0
    %2413 = vmatprep.subr.mxu0 0.0
    %2414 = vmatpush1.msra.mxu0 0.0
    %2415 = vmatprep.subr.mxu0 0.0
    %2416 = vmatpush1.msra.mxu0 0.0
    %2417 = vmatprep.mubr.f32.mxu0 0.0
    %2418 = vmatmul.mubr.f32.gmra.mrb[0].mxu0 %v2351
    %v2419 = vpop.f32.mrb[0].mxu0
    %v2420 = vadd.f32 %v2346, %v2419
    %v2421 = vpop.f32.mrb[0].mxu0
    %2422 = vdwg.mxu0
    %vm2423 = vcmask 25600
    %2424 = vst.msk [vmem:[#allocation2] sm:$0x3] %vm2423, %v2420
    // Predicated region
    $region42: #{attn_decoder_forward.1} parent=1 // pred_check
      _
    $region43: #{attn_decoder_forward.1} parent=1 // pred_check_branch
      %2426 = sbr.rel (0) target = $region45
    $region44: #{attn_decoder_forward.1} parent=1 // pred_region
      %s2428 = ssub.s32 32, 32
      %2429 = vsyncadd [#allocation3], %s2428
      %s2431 = sshll.u32 [#allocation2], 4
      %s2432 = int_to_ptr.vmem [resolvable:$true] %s2431
      %2434 = dma.vmem_to_hbm [thread:$0]  %s2432, 32, %s10, [#allocation3]
    $region45: #{attn_decoder_forward.1} parent=1 // pred_fallthru
      _
    // Predicated region
    $region46: #{attn_decoder_forward.1} parent=1 // pred_check
      _
    $region47: #{attn_decoder_forward.1} parent=1 // pred_check_branch
      %2436 = sbr.rel (0) target = $region49
    $region48: #{attn_decoder_forward.1} parent=1 // pred_region
      %2437 = dma.done [#allocation3], 32
    $region49: #{attn_decoder_forward.1} parent=1 // pred_fallthru
      _
    %2438 = vsyncpa [#allocation3], 1

</llo_original>
